<compile_context>
chip_gen: v6e
topology: v6e:2x2x1
jax: 0.10.0
libtpu: 0.0.40
codegen_flags: <defaults>
</compile_context>

<pallas_src>
import jax
import jax.numpy as jnp
from jax.experimental import pallas as pl
from jax.experimental.pallas import tpu as pltpu

IN_FEATS = 25
OUT_FEATS = 6400
SMALL_BATCH_MAX = 512   # gridless single-block path up to here (output block <= ~13 MB)
TM = 256                # M-tile for the gridded large-batch path


def linear_kernel(x_ref, w_ref, b_ref, o_ref):
    # x_ref: (tm, 25) f32 | w_ref: (25, 6400) bf16 | b_ref: (1, 6400) f32
    # o_ref: (tm, 6400) f32
    # Cast activations to bf16 in-kernel (no host-side prep dispatch), one MXU matmul
    # with f32 accumulation, bias broadcast-add on the VPU.
    x_bf16 = x_ref[...].astype(jnp.bfloat16)
    o_ref[...] = jnp.dot(x_bf16, w_ref[...],
                         preferred_element_type=jnp.float32) + b_ref[...]


def prepare_params(weight_t, bias):
    """One-time param prep: bf16 weight (halves HBM bytes of the big operand),
    f32 bias reshaped to (1, OUT_FEATS) for a lane-dense broadcast add."""
    return weight_t.astype(jnp.bfloat16), bias.reshape(1, OUT_FEATS).astype(jnp.float32)


def model_image_forward(x, w_bf16, bias2d):
    """x: anything reshapeable to (-1, 25). Returns (B, 5, 5, 1, 256) float32."""
    x2d = x.reshape(-1, IN_FEATS).astype(jnp.float32)
    B = x2d.shape[0]

    cost = pl.CostEstimate(
        flops=2 * B * IN_FEATS * OUT_FEATS,
        transcendentals=0,
        bytes_accessed=(x2d.size * 4 + w_bf16.size * 2
                        + bias2d.size * 4 + B * OUT_FEATS * 4),
    )

    if B <= SMALL_BATCH_MAX:
        # Gridless path: full arrays as single VMEM blocks, one MXU matmul.
        out = pl.pallas_call(
            linear_kernel,
            out_shape=jax.ShapeDtypeStruct((B, OUT_FEATS), jnp.float32),
            in_specs=[
                pl.BlockSpec(memory_space=pltpu.MemorySpace.VMEM),  # x  (B, 25)
                pl.BlockSpec(memory_space=pltpu.MemorySpace.VMEM),  # W  (25, 6400) bf16
                pl.BlockSpec(memory_space=pltpu.MemorySpace.VMEM),  # b  (1, 6400)
            ],
            out_specs=pl.BlockSpec(memory_space=pltpu.MemorySpace.VMEM),
            cost_estimate=cost,
        )(x2d, w_bf16, bias2d)
        return out.reshape(-1, 5, 5, 1, 256)

    # Large-batch guard: 1-D "parallel" grid over M; weight & bias stay resident
    # (constant block index), inputs/outputs are pipelined, and on v7x the parallel
    # axis is sharded across both TensorCores.
    B_pad = ((B + TM - 1) // TM) * TM
    x_pad = jnp.pad(x2d, ((0, B_pad - B), (0, 0)))
    out = pl.pallas_call(
        linear_kernel,
        out_shape=jax.ShapeDtypeStruct((B_pad, OUT_FEATS), jnp.float32),
        grid_spec=pltpu.PrefetchScalarGridSpec(
            num_scalar_prefetch=0,
            grid=(B_pad // TM,),
            in_specs=[
                pl.BlockSpec((TM, IN_FEATS), lambda i: (i, 0)),
                pl.BlockSpec((IN_FEATS, OUT_FEATS), lambda i: (0, 0)),
                pl.BlockSpec((1, OUT_FEATS), lambda i: (0, 0)),
            ],
            out_specs=pl.BlockSpec((TM, OUT_FEATS), lambda i: (i, 0)),
        ),
        compiler_params=pltpu.CompilerParams(
            dimension_semantics=("parallel",),
            vmem_limit_bytes=32 * 1024 * 1024,
        ),
        cost_estimate=cost,
    )(x_pad, w_bf16, bias2d)
    return out[:B].reshape(-1, 5, 5, 1, 256)


def init_params(key):
    # Deterministic init mimicking nn.Linear default: U(-1/sqrt(25), 1/sqrt(25)).
    kw, kb = jax.random.split(key)
    bound = 1.0 / (IN_FEATS ** 0.5)
    # PyTorch weight is (6400, 25); store transposed as (25, 6400) for x @ W^T.
    weight_t = jax.random.uniform(kw, (IN_FEATS, OUT_FEATS), jnp.float32, -bound, bound)
    bias = jax.random.uniform(kb, (OUT_FEATS,), jnp.float32, -bound, bound)
    return weight_t, bias


if __name__ == "__main__":
    key = jax.random.PRNGKey(0)
    kx, kp = jax.random.split(key)

    # Batch of 2 single-channel 5x5 "images" (25 features each).
    x = jax.random.normal(kx, (2, 1, 5, 5), dtype=jnp.float32)
    weight_t, bias = init_params(kp)
    w_bf16, bias2d = prepare_params(weight_t, bias)   # one-time bf16 cast / reshape

    fwd = jax.jit(model_image_forward)                # fuses reshape + pallas_call
    out = jax.block_until_ready(fwd(x, w_bf16, bias2d))
    assert out.shape == (2, 5, 5, 1, 256), out.shape

    # (1) Tight check of the kernel math against the same bf16 operands.
    x2d = x.reshape(-1, IN_FEATS)
    ref_bf16 = (jnp.dot(x2d.astype(jnp.bfloat16).astype(jnp.float32),
                        w_bf16.astype(jnp.float32),
                        precision=jax.lax.Precision.HIGHEST)
                + bias[None, :]).reshape(-1, 5, 5, 1, 256)
    assert jnp.allclose(out, ref_bf16, atol=2e-5, rtol=2e-5), \
        "kernel mismatch vs bf16-operand reference"

    # (2) Loose check against the full-precision f32 reference (bf16 quantization slack).
    ref_f32 = (jnp.dot(x2d, weight_t, precision=jax.lax.Precision.HIGHEST)
               + bias[None, :]).reshape(-1, 5, 5, 1, 256)
    assert jnp.allclose(out, ref_f32, atol=5e-2, rtol=5e-2), "mismatch vs f32 reference"

    print("KERNEL_OK")
</pallas_src>

<mosaic_0001>
module attributes {stable_mosaic.version = 11 : i64} {
  func.func @linear_kernel(%arg0: memref<2x25xf32, #tpu.memory_space<vmem>>, %arg1: memref<25x6400xbf16, #tpu.memory_space<vmem>>, %arg2: memref<1x6400xf32, #tpu.memory_space<vmem>>, %arg3: memref<2x6400xf32, #tpu.memory_space<vmem>>) attributes {dimension_semantics = [], scalar_prefetch = 0 : i64, scratch_operands = 0 : i64, tpu.core_type = #tpu.core_type<tc>} {
    %c0 = arith.constant 0 : index
    %c0_0 = arith.constant 0 : index
    %0 = vector.load %arg0[%c0, %c0_0] : memref<2x25xf32, #tpu.memory_space<vmem>>, vector<2x25xf32>
    %1 = arith.truncf %0 : vector<2x25xf32> to vector<2x25xbf16>
    %c0_1 = arith.constant 0 : index
    %c0_2 = arith.constant 0 : index
    %2 = vector.load %arg1[%c0_1, %c0_2] : memref<25x6400xbf16, #tpu.memory_space<vmem>>, vector<25x6400xbf16>
    %cst = arith.constant dense<0.000000e+00> : vector<2x6400xf32>
    %3 = tpu.matmul %1, %2, %cst {dimension_numbers = #tpu.dot_dimension_numbers<[1], [0], [0], [1], [0, 0, 1, 1], [], []>} : vector<2x25xbf16>, vector<25x6400xbf16>, vector<2x6400xf32> -> vector<2x6400xf32>
    %c0_3 = arith.constant 0 : index
    %c0_4 = arith.constant 0 : index
    %4 = vector.load %arg2[%c0_3, %c0_4] : memref<1x6400xf32, #tpu.memory_space<vmem>>, vector<1x6400xf32>
    %5 = vector.broadcast %4 : vector<1x6400xf32> to vector<2x6400xf32>
    %6 = arith.addf %3, %5 : vector<2x6400xf32>
    %c0_5 = arith.constant 0 : index
    %c0_6 = arith.constant 0 : index
    %7 = vector.load %arg3[%c0_5, %c0_6] : memref<2x6400xf32, #tpu.memory_space<vmem>>, vector<2x6400xf32>
    tpu.vector_store %arg3[%c0_5, %c0_6], %6 {strides = array<i32>} : memref<2x6400xf32, #tpu.memory_space<vmem>>, vector<2x6400xf32>,
    return
  }
}

</mosaic_0001>

<llo_original>
// kernel: model_image_forward.1
$region0: #{model_image_forward.1}
  #allocation0 [shape = 'u32[]', space=smem, size = 0x4, offset = 0x4, fixed_abs, tag = 'smem constant byte address 0x4 - core index']
  #allocation1 [shape = 'u32[144,128]{1,0:T(1,128)}', space=vmem, size = 0x12000, scoped, tag = 'internal scratch']
  %s0 = inlined_call_operand.vmem [shape: f32[2,25], index: 0, kind: input, shape index: {}]
  %s1 = inlined_call_operand.hbm [shape: bf16[25,6400], index: 1, kind: input, shape index: {}]
  %s2 = inlined_call_operand.hbm [shape: f32[1,6400], index: 2, kind: input, shape index: {}]
  %s3 = inlined_call_operand.vmem [shape: f32[2,6400], index: 3, kind: output, shape index: {}]
  %s4 = sld [smem:[#allocation0]]
  $region30: #{model_image_forward.1} parent=0
    _
  %s6 = ssub.s32 1, %s4
  %s7 = scalar_select 0, %s6, %s4
  $region1: #{model_image_forward.1} parent=0
    #allocation2 [shape = 'u8[409600]{0}', space=vmem, size = 0x64000, scoped, tag = 'input window, operand 1, single buffered']
    #allocation3 [shape = 's32[1]{0}', space=sflag, size = 0x4, scoped, tag = 'scoped memory for model_image_forward.1']
    #allocation4 [shape = 'u8[25600]{0}', space=vmem, size = 0x6400, scoped, tag = 'input window, operand 2, single buffered']
    #allocation5 [shape = 's32[1]{0}', space=sflag, size = 0x4, scoped, tag = 'scoped memory for model_image_forward.1']
    %8 = vsyncpa [#allocation3], 0
    %9 = vsyncpa [#allocation5], 0
    // Predicated region
    $region2: #{model_image_forward.1} parent=1 // pred_check
      _
    $region3: #{model_image_forward.1} parent=1 // pred_check_branch
      %11 = sbr.rel (0) target = $region5
    $region4: #{model_image_forward.1} parent=1 // pred_region
      _
    $region5: #{model_image_forward.1} parent=1 // pred_fallthru
      _
    // Predicated region
    $region6: #{model_image_forward.1} parent=1 // pred_check
      _
    $region7: #{model_image_forward.1} parent=1 // pred_check_branch
      %13 = sbr.rel (0) target = $region9
    $region8: #{model_image_forward.1} parent=1 // pred_region
      %s15 = ssub.s32 12800, 12800
      %16 = vsyncadd [#allocation3], %s15
      %s17 = sshll.u32 [#allocation2], 4
      %s18 = int_to_ptr.vmem [resolvable:$true] %s17
      %23 = dma.hbm_to_vmem [thread:$0]  %s1, 12800, %s18, [#allocation3], 3200, 3200, 200
    $region9: #{model_image_forward.1} parent=1 // pred_fallthru
      _
    // Predicated region
    $region10: #{model_image_forward.1} parent=1 // pred_check
      _
    $region11: #{model_image_forward.1} parent=1 // pred_check_branch
      %25 = sbr.rel (0) target = $region13
    $region12: #{model_image_forward.1} parent=1 // pred_region
      %s27 = ssub.s32 800, 800
      %28 = vsyncadd [#allocation5], %s27
      %s30 = sshll.u32 [#allocation4], 4
      %s31 = int_to_ptr.vmem [resolvable:$true] %s30
      %33 = dma.hbm_to_vmem [thread:$0]  %s2, 800, %s31, [#allocation5]
    $region13: #{model_image_forward.1} parent=1 // pred_fallthru
      _
    // Predicated region
    $region14: #{model_image_forward.1} parent=1 // pred_check
      _
    $region15: #{model_image_forward.1} parent=1 // pred_check_branch
      %35 = sbr.rel (0) target = $region17
    $region16: #{model_image_forward.1} parent=1 // pred_region
      %36 = dma.done [#allocation3], 12800
    $region17: #{model_image_forward.1} parent=1 // pred_fallthru
      _
    // Predicated region
    $region18: #{model_image_forward.1} parent=1 // pred_check
      _
    $region19: #{model_image_forward.1} parent=1 // pred_check_branch
      %38 = sbr.rel (0) target = $region21
    $region20: #{model_image_forward.1} parent=1 // pred_region
      %39 = dma.done [#allocation5], 800
    $region21: #{model_image_forward.1} parent=1 // pred_fallthru
      _
    %v41 = vld [vmem:[%s0] sm:$0x3]
    %v42 = vpack.c.bf16 %v41, %v41
    %v43 = vld [vmem:[#allocation2] sm:$0xff]
    %v44 = vld [vmem:[#allocation2 + $0x8] sm:$0xff]
    %v45 = vld [vmem:[#allocation2 + $0x10] sm:$0xff]
    %v46 = vld [vmem:[#allocation2 + $0x18] sm:$0xff]
    %v47 = vld [vmem:[#allocation2 + $0x20] sm:$0xff]
    %v48 = vld [vmem:[#allocation2 + $0x28] sm:$0xff]
    %v49 = vld [vmem:[#allocation2 + $0x30] sm:$0xff]
    %v50 = vld [vmem:[#allocation2 + $0x38] sm:$0xff]
    %v51 = vld [vmem:[#allocation2 + $0x40] sm:$0xff]
    %v52 = vld [vmem:[#allocation2 + $0x48] sm:$0xff]
    %v53 = vld [vmem:[#allocation2 + $0x50] sm:$0xff]
    %v54 = vld [vmem:[#allocation2 + $0x58] sm:$0xff]
    %v55 = vld [vmem:[#allocation2 + $0x60] sm:$0xff]
    %v56 = vld [vmem:[#allocation2 + $0x68] sm:$0xff]
    %v57 = vld [vmem:[#allocation2 + $0x70] sm:$0xff]
    %v58 = vld [vmem:[#allocation2 + $0x78] sm:$0xff]
    %v59 = vld [vmem:[#allocation2 + $0x80] sm:$0xff]
    %v60 = vld [vmem:[#allocation2 + $0x88] sm:$0xff]
    %v61 = vld [vmem:[#allocation2 + $0x90] sm:$0xff]
    %v62 = vld [vmem:[#allocation2 + $0x98] sm:$0xff]
    %v63 = vld [vmem:[#allocation2 + $0xa0] sm:$0xff]
    %v64 = vld [vmem:[#allocation2 + $0xa8] sm:$0xff]
    %v65 = vld [vmem:[#allocation2 + $0xb0] sm:$0xff]
    %v66 = vld [vmem:[#allocation2 + $0xb8] sm:$0xff]
    %v67 = vld [vmem:[#allocation2 + $0xc0] sm:$0xff]
    %v68 = vld [vmem:[#allocation2 + $0xc8] sm:$0xff]
    %v69 = vld [vmem:[#allocation2 + $0xd0] sm:$0xff]
    %v70 = vld [vmem:[#allocation2 + $0xd8] sm:$0xff]
    %v71 = vld [vmem:[#allocation2 + $0xe0] sm:$0xff]
    %v72 = vld [vmem:[#allocation2 + $0xe8] sm:$0xff]
    %v73 = vld [vmem:[#allocation2 + $0xf0] sm:$0xff]
    %v74 = vld [vmem:[#allocation2 + $0xf8] sm:$0xff]
    %v75 = vld [vmem:[#allocation2 + $0x100] sm:$0xff]
    %v76 = vld [vmem:[#allocation2 + $0x108] sm:$0xff]
    %v77 = vld [vmem:[#allocation2 + $0x110] sm:$0xff]
    %v78 = vld [vmem:[#allocation2 + $0x118] sm:$0xff]
    %v79 = vld [vmem:[#allocation2 + $0x120] sm:$0xff]
    %v80 = vld [vmem:[#allocation2 + $0x128] sm:$0xff]
    %v81 = vld [vmem:[#allocation2 + $0x130] sm:$0xff]
    %v82 = vld [vmem:[#allocation2 + $0x138] sm:$0xff]
    %v83 = vld [vmem:[#allocation2 + $0x140] sm:$0xff]
    %v84 = vld [vmem:[#allocation2 + $0x148] sm:$0xff]
    %v85 = vld [vmem:[#allocation2 + $0x150] sm:$0xff]
    %v86 = vld [vmem:[#allocation2 + $0x158] sm:$0xff]
    %v87 = vld [vmem:[#allocation2 + $0x160] sm:$0xff]
    %v88 = vld [vmem:[#allocation2 + $0x168] sm:$0xff]
    %v89 = vld [vmem:[#allocation2 + $0x170] sm:$0xff]
    %v90 = vld [vmem:[#allocation2 + $0x178] sm:$0xff]
    %v91 = vld [vmem:[#allocation2 + $0x180] sm:$0xff]
    %v92 = vld [vmem:[#allocation2 + $0x188] sm:$0xff]
    %v93 = vld [vmem:[#allocation2 + $0x190] sm:$0xff]
    %v94 = vld [vmem:[#allocation2 + $0x198] sm:$0xff]
    %v95 = vld [vmem:[#allocation2 + $0x1a0] sm:$0xff]
    %v96 = vld [vmem:[#allocation2 + $0x1a8] sm:$0xff]
    %v97 = vld [vmem:[#allocation2 + $0x1b0] sm:$0xff]
    %v98 = vld [vmem:[#allocation2 + $0x1b8] sm:$0xff]
    %v99 = vld [vmem:[#allocation2 + $0x1c0] sm:$0xff]
    %v100 = vld [vmem:[#allocation2 + $0x1c8] sm:$0xff]
    %v101 = vld [vmem:[#allocation2 + $0x1d0] sm:$0xff]
    %v102 = vld [vmem:[#allocation2 + $0x1d8] sm:$0xff]
    %v103 = vld [vmem:[#allocation2 + $0x1e0] sm:$0xff]
    %v104 = vld [vmem:[#allocation2 + $0x1e8] sm:$0xff]
    %v105 = vld [vmem:[#allocation2 + $0x1f0] sm:$0xff]
    %v106 = vld [vmem:[#allocation2 + $0x1f8] sm:$0xff]
    %v107 = vld [vmem:[#allocation2 + $0x200] sm:$0xff]
    %v108 = vld [vmem:[#allocation2 + $0x208] sm:$0xff]
    %v109 = vld [vmem:[#allocation2 + $0x210] sm:$0xff]
    %v110 = vld [vmem:[#allocation2 + $0x218] sm:$0xff]
    %v111 = vld [vmem:[#allocation2 + $0x220] sm:$0xff]
    %v112 = vld [vmem:[#allocation2 + $0x228] sm:$0xff]
    %v113 = vld [vmem:[#allocation2 + $0x230] sm:$0xff]
    %v114 = vld [vmem:[#allocation2 + $0x238] sm:$0xff]
    %v115 = vld [vmem:[#allocation2 + $0x240] sm:$0xff]
    %v116 = vld [vmem:[#allocation2 + $0x248] sm:$0xff]
    %v117 = vld [vmem:[#allocation2 + $0x250] sm:$0xff]
    %v118 = vld [vmem:[#allocation2 + $0x258] sm:$0x11]
    %v119 = vld [vmem:[#allocation2 + $0x260] sm:$0x11]
    %v120 = vld [vmem:[#allocation2 + $0x268] sm:$0x11]
    %v121 = vld [vmem:[#allocation2 + $0x270] sm:$0x11]
    %v122 = vld [vmem:[#allocation2 + $0x278] sm:$0x11]
    %v123 = vld [vmem:[#allocation2 + $0x280] sm:$0x11]
    %v124 = vld [vmem:[#allocation2 + $0x288] sm:$0x11]
    %v125 = vld [vmem:[#allocation2 + $0x290] sm:$0x11]
    %v126 = vld [vmem:[#allocation2 + $0x298] sm:$0x11]
    %v127 = vld [vmem:[#allocation2 + $0x2a0] sm:$0x11]
    %v128 = vld [vmem:[#allocation2 + $0x2a8] sm:$0x11]
    %v129 = vld [vmem:[#allocation2 + $0x2b0] sm:$0x11]
    %v130 = vld [vmem:[#allocation2 + $0x2b8] sm:$0x11]
    %v131 = vld [vmem:[#allocation2 + $0x2c0] sm:$0x11]
    %v132 = vld [vmem:[#allocation2 + $0x2c8] sm:$0x11]
    %v133 = vld [vmem:[#allocation2 + $0x2d0] sm:$0x11]
    %v134 = vld [vmem:[#allocation2 + $0x2d8] sm:$0x11]
    %v135 = vld [vmem:[#allocation2 + $0x2e0] sm:$0x11]
    %v136 = vld [vmem:[#allocation2 + $0x2e8] sm:$0x11]
    %v137 = vld [vmem:[#allocation2 + $0x2f0] sm:$0x11]
    %v138 = vld [vmem:[#allocation2 + $0x2f8] sm:$0x11]
    %v139 = vld [vmem:[#allocation2 + $0x300] sm:$0x11]
    %v140 = vld [vmem:[#allocation2 + $0x308] sm:$0x11]
    %v141 = vld [vmem:[#allocation2 + $0x310] sm:$0x11]
    %v142 = vld [vmem:[#allocation2 + $0x318] sm:$0x11]
    %v143 = vld [vmem:[#allocation4] sm:$0xff]
    %v144 = vld [vmem:[#allocation4 + $0x8] sm:$0xff]
    %v145 = vld [vmem:[#allocation4 + $0x10] sm:$0xff]
    %v146 = vld [vmem:[#allocation4 + $0x18] sm:$0xff]
    %v147 = vld [vmem:[#allocation4 + $0x20] sm:$0xff]
    %v148 = vld [vmem:[#allocation4 + $0x28] sm:$0xff]
    %v149 = vld [vmem:[#allocation4 + $0x30] sm:$0x3]
    %v157 = vlaneseq
    %v158 = vshrl.u32 %v157, 7
    %v159 = vsub.s32 0, %v158
    %v160 = vrot.slane %v143, %v159
    %v161 = vlaneseq
    %v162 = vshrl.u32 %v161, 7
    %v163 = vsub.s32 1, %v162
    %v164 = vrot.slane %v143, %v163
    %v165 = vlaneseq
    %v166 = vshrl.u32 %v165, 7
    %v167 = vsub.s32 2, %v166
    %v168 = vrot.slane %v143, %v167
    %v169 = vlaneseq
    %v170 = vshrl.u32 %v169, 7
    %v171 = vsub.s32 3, %v170
    %v172 = vrot.slane %v143, %v171
    %v173 = vlaneseq
    %v174 = vshrl.u32 %v173, 7
    %v175 = vsub.s32 4, %v174
    %v176 = vrot.slane %v143, %v175
    %v177 = vlaneseq
    %v178 = vshrl.u32 %v177, 7
    %v179 = vsub.s32 5, %v178
    %v180 = vrot.slane %v143, %v179
    %v181 = vlaneseq
    %v182 = vshrl.u32 %v181, 7
    %v183 = vsub.s32 6, %v182
    %v184 = vrot.slane %v143, %v183
    %v185 = vlaneseq
    %v186 = vshrl.u32 %v185, 7
    %v187 = vsub.s32 7, %v186
    %v188 = vrot.slane %v143, %v187
    %v189 = vlaneseq
    %v190 = vshrl.u32 %v189, 7
    %v191 = vsub.s32 0, %v190
    %v192 = vrot.slane %v144, %v191
    %v193 = vlaneseq
    %v194 = vshrl.u32 %v193, 7
    %v195 = vsub.s32 1, %v194
    %v196 = vrot.slane %v144, %v195
    %v197 = vlaneseq
    %v198 = vshrl.u32 %v197, 7
    %v199 = vsub.s32 2, %v198
    %v200 = vrot.slane %v144, %v199
    %v201 = vlaneseq
    %v202 = vshrl.u32 %v201, 7
    %v203 = vsub.s32 3, %v202
    %v204 = vrot.slane %v144, %v203
    %v205 = vlaneseq
    %v206 = vshrl.u32 %v205, 7
    %v207 = vsub.s32 4, %v206
    %v208 = vrot.slane %v144, %v207
    %v209 = vlaneseq
    %v210 = vshrl.u32 %v209, 7
    %v211 = vsub.s32 5, %v210
    %v212 = vrot.slane %v144, %v211
    %v213 = vlaneseq
    %v214 = vshrl.u32 %v213, 7
    %v215 = vsub.s32 6, %v214
    %v216 = vrot.slane %v144, %v215
    %v217 = vlaneseq
    %v218 = vshrl.u32 %v217, 7
    %v219 = vsub.s32 7, %v218
    %v220 = vrot.slane %v144, %v219
    %v221 = vlaneseq
    %v222 = vshrl.u32 %v221, 7
    %v223 = vsub.s32 0, %v222
    %v224 = vrot.slane %v145, %v223
    %v225 = vlaneseq
    %v226 = vshrl.u32 %v225, 7
    %v227 = vsub.s32 1, %v226
    %v228 = vrot.slane %v145, %v227
    %v229 = vlaneseq
    %v230 = vshrl.u32 %v229, 7
    %v231 = vsub.s32 2, %v230
    %v232 = vrot.slane %v145, %v231
    %v233 = vlaneseq
    %v234 = vshrl.u32 %v233, 7
    %v235 = vsub.s32 3, %v234
    %v236 = vrot.slane %v145, %v235
    %v237 = vlaneseq
    %v238 = vshrl.u32 %v237, 7
    %v239 = vsub.s32 4, %v238
    %v240 = vrot.slane %v145, %v239
    %v241 = vlaneseq
    %v242 = vshrl.u32 %v241, 7
    %v243 = vsub.s32 5, %v242
    %v244 = vrot.slane %v145, %v243
    %v245 = vlaneseq
    %v246 = vshrl.u32 %v245, 7
    %v247 = vsub.s32 6, %v246
    %v248 = vrot.slane %v145, %v247
    %v249 = vlaneseq
    %v250 = vshrl.u32 %v249, 7
    %v251 = vsub.s32 7, %v250
    %v252 = vrot.slane %v145, %v251
    %v253 = vlaneseq
    %v254 = vshrl.u32 %v253, 7
    %v255 = vsub.s32 0, %v254
    %v256 = vrot.slane %v146, %v255
    %v257 = vlaneseq
    %v258 = vshrl.u32 %v257, 7
    %v259 = vsub.s32 1, %v258
    %v260 = vrot.slane %v146, %v259
    %v261 = vlaneseq
    %v262 = vshrl.u32 %v261, 7
    %v263 = vsub.s32 2, %v262
    %v264 = vrot.slane %v146, %v263
    %v265 = vlaneseq
    %v266 = vshrl.u32 %v265, 7
    %v267 = vsub.s32 3, %v266
    %v268 = vrot.slane %v146, %v267
    %v269 = vlaneseq
    %v270 = vshrl.u32 %v269, 7
    %v271 = vsub.s32 4, %v270
    %v272 = vrot.slane %v146, %v271
    %v273 = vlaneseq
    %v274 = vshrl.u32 %v273, 7
    %v275 = vsub.s32 5, %v274
    %v276 = vrot.slane %v146, %v275
    %v277 = vlaneseq
    %v278 = vshrl.u32 %v277, 7
    %v279 = vsub.s32 6, %v278
    %v280 = vrot.slane %v146, %v279
    %v281 = vlaneseq
    %v282 = vshrl.u32 %v281, 7
    %v283 = vsub.s32 7, %v282
    %v284 = vrot.slane %v146, %v283
    %v285 = vlaneseq
    %v286 = vshrl.u32 %v285, 7
    %v287 = vsub.s32 0, %v286
    %v288 = vrot.slane %v147, %v287
    %v289 = vlaneseq
    %v290 = vshrl.u32 %v289, 7
    %v291 = vsub.s32 1, %v290
    %v292 = vrot.slane %v147, %v291
    %v293 = vlaneseq
    %v294 = vshrl.u32 %v293, 7
    %v295 = vsub.s32 2, %v294
    %v296 = vrot.slane %v147, %v295
    %v297 = vlaneseq
    %v298 = vshrl.u32 %v297, 7
    %v299 = vsub.s32 3, %v298
    %v300 = vrot.slane %v147, %v299
    %v301 = vlaneseq
    %v302 = vshrl.u32 %v301, 7
    %v303 = vsub.s32 4, %v302
    %v304 = vrot.slane %v147, %v303
    %v305 = vlaneseq
    %v306 = vshrl.u32 %v305, 7
    %v307 = vsub.s32 5, %v306
    %v308 = vrot.slane %v147, %v307
    %v309 = vlaneseq
    %v310 = vshrl.u32 %v309, 7
    %v311 = vsub.s32 6, %v310
    %v312 = vrot.slane %v147, %v311
    %v313 = vlaneseq
    %v314 = vshrl.u32 %v313, 7
    %v315 = vsub.s32 7, %v314
    %v316 = vrot.slane %v147, %v315
    %v317 = vlaneseq
    %v318 = vshrl.u32 %v317, 7
    %v319 = vsub.s32 0, %v318
    %v320 = vrot.slane %v148, %v319
    %v321 = vlaneseq
    %v322 = vshrl.u32 %v321, 7
    %v323 = vsub.s32 1, %v322
    %v324 = vrot.slane %v148, %v323
    %v325 = vlaneseq
    %v326 = vshrl.u32 %v325, 7
    %v327 = vsub.s32 2, %v326
    %v328 = vrot.slane %v148, %v327
    %v329 = vlaneseq
    %v330 = vshrl.u32 %v329, 7
    %v331 = vsub.s32 3, %v330
    %v332 = vrot.slane %v148, %v331
    %v333 = vlaneseq
    %v334 = vshrl.u32 %v333, 7
    %v335 = vsub.s32 4, %v334
    %v336 = vrot.slane %v148, %v335
    %v337 = vlaneseq
    %v338 = vshrl.u32 %v337, 7
    %v339 = vsub.s32 5, %v338
    %v340 = vrot.slane %v148, %v339
    %v341 = vlaneseq
    %v342 = vshrl.u32 %v341, 7
    %v343 = vsub.s32 6, %v342
    %v344 = vrot.slane %v148, %v343
    %v345 = vlaneseq
    %v346 = vshrl.u32 %v345, 7
    %v347 = vsub.s32 7, %v346
    %v348 = vrot.slane %v148, %v347
    %v349 = vlaneseq
    %v350 = vshrl.u32 %v349, 7
    %v351 = vsub.s32 0, %v350
    %v352 = vrot.slane %v149, %v351
    %v353 = vlaneseq
    %v354 = vshrl.u32 %v353, 7
    %v355 = vsub.s32 1, %v354
    %v356 = vrot.slane %v149, %v355
    %v507 = vunpack.c.l.b16 %v43
    %v508 = vunpack.c.h.b16 %v43
    %v509 = vunpack.c.l.b16 %v44
    %v510 = vunpack.c.h.b16 %v44
    %v511 = vunpack.c.l.b16 %v45
    %v512 = vunpack.c.h.b16 %v45
    %v513 = vunpack.c.l.b16 %v46
    %v514 = vunpack.c.h.b16 %v46
    %v515 = vunpack.c.l.b16 %v47
    %v516 = vunpack.c.h.b16 %v47
    %v517 = vunpack.c.l.b16 %v48
    %v518 = vunpack.c.h.b16 %v48
    %v519 = vunpack.c.l.b16 %v49
    %v520 = vunpack.c.h.b16 %v49
    %v521 = vunpack.c.l.b16 %v50
    %v522 = vunpack.c.h.b16 %v50
    %v523 = vunpack.c.l.b16 %v51
    %v524 = vunpack.c.h.b16 %v51
    %v525 = vunpack.c.l.b16 %v52
    %v526 = vunpack.c.h.b16 %v52
    %v527 = vunpack.c.l.b16 %v53
    %v528 = vunpack.c.h.b16 %v53
    %v529 = vunpack.c.l.b16 %v54
    %v530 = vunpack.c.h.b16 %v54
    %v531 = vunpack.c.l.b16 %v55
    %v532 = vunpack.c.h.b16 %v55
    %v533 = vunpack.c.l.b16 %v56
    %v534 = vunpack.c.h.b16 %v56
    %v535 = vunpack.c.l.b16 %v57
    %v536 = vunpack.c.h.b16 %v57
    %v537 = vunpack.c.l.b16 %v58
    %v538 = vunpack.c.h.b16 %v58
    %v539 = vunpack.c.l.b16 %v59
    %v540 = vunpack.c.h.b16 %v59
    %v541 = vunpack.c.l.b16 %v60
    %v542 = vunpack.c.h.b16 %v60
    %v543 = vunpack.c.l.b16 %v61
    %v544 = vunpack.c.h.b16 %v61
    %v545 = vunpack.c.l.b16 %v62
    %v546 = vunpack.c.h.b16 %v62
    %v547 = vunpack.c.l.b16 %v63
    %v548 = vunpack.c.h.b16 %v63
    %v549 = vunpack.c.l.b16 %v64
    %v550 = vunpack.c.h.b16 %v64
    %v551 = vunpack.c.l.b16 %v65
    %v552 = vunpack.c.h.b16 %v65
    %v553 = vunpack.c.l.b16 %v66
    %v554 = vunpack.c.h.b16 %v66
    %v555 = vunpack.c.l.b16 %v67
    %v556 = vunpack.c.h.b16 %v67
    %v557 = vunpack.c.l.b16 %v68
    %v558 = vunpack.c.h.b16 %v68
    %v559 = vunpack.c.l.b16 %v69
    %v560 = vunpack.c.h.b16 %v69
    %v561 = vunpack.c.l.b16 %v70
    %v562 = vunpack.c.h.b16 %v70
    %v563 = vunpack.c.l.b16 %v71
    %v564 = vunpack.c.h.b16 %v71
    %v565 = vunpack.c.l.b16 %v72
    %v566 = vunpack.c.h.b16 %v72
    %v567 = vunpack.c.l.b16 %v73
    %v568 = vunpack.c.h.b16 %v73
    %v569 = vunpack.c.l.b16 %v74
    %v570 = vunpack.c.h.b16 %v74
    %v571 = vunpack.c.l.b16 %v75
    %v572 = vunpack.c.h.b16 %v75
    %v573 = vunpack.c.l.b16 %v76
    %v574 = vunpack.c.h.b16 %v76
    %v575 = vunpack.c.l.b16 %v77
    %v576 = vunpack.c.h.b16 %v77
    %v577 = vunpack.c.l.b16 %v78
    %v578 = vunpack.c.h.b16 %v78
    %v579 = vunpack.c.l.b16 %v79
    %v580 = vunpack.c.h.b16 %v79
    %v581 = vunpack.c.l.b16 %v80
    %v582 = vunpack.c.h.b16 %v80
    %v583 = vunpack.c.l.b16 %v81
    %v584 = vunpack.c.h.b16 %v81
    %v585 = vunpack.c.l.b16 %v82
    %v586 = vunpack.c.h.b16 %v82
    %v587 = vunpack.c.l.b16 %v83
    %v588 = vunpack.c.h.b16 %v83
    %v589 = vunpack.c.l.b16 %v84
    %v590 = vunpack.c.h.b16 %v84
    %v591 = vunpack.c.l.b16 %v85
    %v592 = vunpack.c.h.b16 %v85
    %v593 = vunpack.c.l.b16 %v86
    %v594 = vunpack.c.h.b16 %v86
    %v595 = vunpack.c.l.b16 %v87
    %v596 = vunpack.c.h.b16 %v87
    %v597 = vunpack.c.l.b16 %v88
    %v598 = vunpack.c.h.b16 %v88
    %v599 = vunpack.c.l.b16 %v89
    %v600 = vunpack.c.h.b16 %v89
    %v601 = vunpack.c.l.b16 %v90
    %v602 = vunpack.c.h.b16 %v90
    %v603 = vunpack.c.l.b16 %v91
    %v604 = vunpack.c.h.b16 %v91
    %v605 = vunpack.c.l.b16 %v92
    %v606 = vunpack.c.h.b16 %v92
    %v607 = vunpack.c.l.b16 %v93
    %v608 = vunpack.c.h.b16 %v93
    %v609 = vunpack.c.l.b16 %v94
    %v610 = vunpack.c.h.b16 %v94
    %v611 = vunpack.c.l.b16 %v95
    %v612 = vunpack.c.h.b16 %v95
    %v613 = vunpack.c.l.b16 %v96
    %v614 = vunpack.c.h.b16 %v96
    %v615 = vunpack.c.l.b16 %v97
    %v616 = vunpack.c.h.b16 %v97
    %v617 = vunpack.c.l.b16 %v98
    %v618 = vunpack.c.h.b16 %v98
    %v619 = vunpack.c.l.b16 %v99
    %v620 = vunpack.c.h.b16 %v99
    %v621 = vunpack.c.l.b16 %v100
    %v622 = vunpack.c.h.b16 %v100
    %v623 = vunpack.c.l.b16 %v101
    %v624 = vunpack.c.h.b16 %v101
    %v625 = vunpack.c.l.b16 %v102
    %v626 = vunpack.c.h.b16 %v102
    %v627 = vunpack.c.l.b16 %v103
    %v628 = vunpack.c.h.b16 %v103
    %v629 = vunpack.c.l.b16 %v104
    %v630 = vunpack.c.h.b16 %v104
    %v631 = vunpack.c.l.b16 %v105
    %v632 = vunpack.c.h.b16 %v105
    %v633 = vunpack.c.l.b16 %v106
    %v634 = vunpack.c.h.b16 %v106
    %v635 = vunpack.c.l.b16 %v107
    %v636 = vunpack.c.h.b16 %v107
    %v637 = vunpack.c.l.b16 %v108
    %v638 = vunpack.c.h.b16 %v108
    %v639 = vunpack.c.l.b16 %v109
    %v640 = vunpack.c.h.b16 %v109
    %v641 = vunpack.c.l.b16 %v110
    %v642 = vunpack.c.h.b16 %v110
    %v643 = vunpack.c.l.b16 %v111
    %v644 = vunpack.c.h.b16 %v111
    %v645 = vunpack.c.l.b16 %v112
    %v646 = vunpack.c.h.b16 %v112
    %v647 = vunpack.c.l.b16 %v113
    %v648 = vunpack.c.h.b16 %v113
    %v649 = vunpack.c.l.b16 %v114
    %v650 = vunpack.c.h.b16 %v114
    %v651 = vunpack.c.l.b16 %v115
    %v652 = vunpack.c.h.b16 %v115
    %v653 = vunpack.c.l.b16 %v116
    %v654 = vunpack.c.h.b16 %v116
    %v655 = vunpack.c.l.b16 %v117
    %v656 = vunpack.c.h.b16 %v117
    %v657 = vunpack.c.l.b16 %v118
    %v658 = vunpack.c.h.b16 %v118
    %v659 = vunpack.c.l.b16 %v119
    %v660 = vunpack.c.h.b16 %v119
    %v661 = vunpack.c.l.b16 %v120
    %v662 = vunpack.c.h.b16 %v120
    %v663 = vunpack.c.l.b16 %v121
    %v664 = vunpack.c.h.b16 %v121
    %v665 = vunpack.c.l.b16 %v122
    %v666 = vunpack.c.h.b16 %v122
    %v667 = vunpack.c.l.b16 %v123
    %v668 = vunpack.c.h.b16 %v123
    %v669 = vunpack.c.l.b16 %v124
    %v670 = vunpack.c.h.b16 %v124
    %v671 = vunpack.c.l.b16 %v125
    %v672 = vunpack.c.h.b16 %v125
    %v673 = vunpack.c.l.b16 %v126
    %v674 = vunpack.c.h.b16 %v126
    %v675 = vunpack.c.l.b16 %v127
    %v676 = vunpack.c.h.b16 %v127
    %v677 = vunpack.c.l.b16 %v128
    %v678 = vunpack.c.h.b16 %v128
    %v679 = vunpack.c.l.b16 %v129
    %v680 = vunpack.c.h.b16 %v129
    %v681 = vunpack.c.l.b16 %v130
    %v682 = vunpack.c.h.b16 %v130
    %v683 = vunpack.c.l.b16 %v131
    %v684 = vunpack.c.h.b16 %v131
    %v685 = vunpack.c.l.b16 %v132
    %v686 = vunpack.c.h.b16 %v132
    %v687 = vunpack.c.l.b16 %v133
    %v688 = vunpack.c.h.b16 %v133
    %v689 = vunpack.c.l.b16 %v134
    %v690 = vunpack.c.h.b16 %v134
    %v691 = vunpack.c.l.b16 %v135
    %v692 = vunpack.c.h.b16 %v135
    %v693 = vunpack.c.l.b16 %v136
    %v694 = vunpack.c.h.b16 %v136
    %v695 = vunpack.c.l.b16 %v137
    %v696 = vunpack.c.h.b16 %v137
    %v697 = vunpack.c.l.b16 %v138
    %v698 = vunpack.c.h.b16 %v138
    %v699 = vunpack.c.l.b16 %v139
    %v700 = vunpack.c.h.b16 %v139
    %v701 = vunpack.c.l.b16 %v140
    %v702 = vunpack.c.h.b16 %v140
    %v703 = vunpack.c.l.b16 %v141
    %v704 = vunpack.c.h.b16 %v141
    %v705 = vunpack.c.l.b16 %v142
    %v706 = vunpack.c.h.b16 %v142
    %v707 = vpack.c.b16 %v557, %v507
    %v708 = vpack.c.b16 %v558, %v508
    %v709 = vpack.c.b16 %v559, %v509
    %v710 = vpack.c.b16 %v560, %v510
    %v711 = vpack.c.b16 %v561, %v511
    %v712 = vpack.c.b16 %v562, %v512
    %v713 = vpack.c.b16 %v563, %v513
    %v714 = vpack.c.b16 %v564, %v514
    %v715 = vpack.c.b16 %v565, %v515
    %v716 = vpack.c.b16 %v566, %v516
    %v717 = vpack.c.b16 %v567, %v517
    %v718 = vpack.c.b16 %v568, %v518
    %v719 = vpack.c.b16 %v569, %v519
    %v720 = vpack.c.b16 %v570, %v520
    %v721 = vpack.c.b16 %v571, %v521
    %v722 = vpack.c.b16 %v572, %v522
    %v723 = vpack.c.b16 %v573, %v523
    %v724 = vpack.c.b16 %v574, %v524
    %v725 = vpack.c.b16 %v575, %v525
    %v726 = vpack.c.b16 %v576, %v526
    %v727 = vpack.c.b16 %v577, %v527
    %v728 = vpack.c.b16 %v578, %v528
    %v729 = vpack.c.b16 %v579, %v529
    %v730 = vpack.c.b16 %v580, %v530
    %v731 = vpack.c.b16 %v581, %v531
    %v732 = vpack.c.b16 %v582, %v532
    %v733 = vpack.c.b16 %v583, %v533
    %v734 = vpack.c.b16 %v584, %v534
    %v735 = vpack.c.b16 %v585, %v535
    %v736 = vpack.c.b16 %v586, %v536
    %v737 = vpack.c.b16 %v587, %v537
    %v738 = vpack.c.b16 %v588, %v538
    %v739 = vpack.c.b16 %v589, %v539
    %v740 = vpack.c.b16 %v590, %v540
    %v741 = vpack.c.b16 %v591, %v541
    %v742 = vpack.c.b16 %v592, %v542
    %v743 = vpack.c.b16 %v593, %v543
    %v744 = vpack.c.b16 %v594, %v544
    %v745 = vpack.c.b16 %v595, %v545
    %v746 = vpack.c.b16 %v596, %v546
    %v747 = vpack.c.b16 %v597, %v547
    %v748 = vpack.c.b16 %v598, %v548
    %v749 = vpack.c.b16 %v599, %v549
    %v750 = vpack.c.b16 %v600, %v550
    %v751 = vpack.c.b16 %v601, %v551
    %v752 = vpack.c.b16 %v602, %v552
    %v753 = vpack.c.b16 %v603, %v553
    %v754 = vpack.c.b16 %v604, %v554
    %v755 = vpack.c.b16 %v605, %v555
    %v756 = vpack.c.b16 %v606, %v556
    %v757 = vpack.c.b16 %v657, %v607
    %v758 = vpack.c.b16 %v658, %v608
    %v759 = vpack.c.b16 %v659, %v609
    %v760 = vpack.c.b16 %v660, %v610
    %v761 = vpack.c.b16 %v661, %v611
    %v762 = vpack.c.b16 %v662, %v612
    %v763 = vpack.c.b16 %v663, %v613
    %v764 = vpack.c.b16 %v664, %v614
    %v765 = vpack.c.b16 %v665, %v615
    %v766 = vpack.c.b16 %v666, %v616
    %v767 = vpack.c.b16 %v667, %v617
    %v768 = vpack.c.b16 %v668, %v618
    %v769 = vpack.c.b16 %v669, %v619
    %v770 = vpack.c.b16 %v670, %v620
    %v771 = vpack.c.b16 %v671, %v621
    %v772 = vpack.c.b16 %v672, %v622
    %v773 = vpack.c.b16 %v673, %v623
    %v774 = vpack.c.b16 %v674, %v624
    %v775 = vpack.c.b16 %v675, %v625
    %v776 = vpack.c.b16 %v676, %v626
    %v777 = vpack.c.b16 %v677, %v627
    %v778 = vpack.c.b16 %v678, %v628
    %v779 = vpack.c.b16 %v679, %v629
    %v780 = vpack.c.b16 %v680, %v630
    %v781 = vpack.c.b16 %v681, %v631
    %v782 = vpack.c.b16 %v682, %v632
    %v783 = vpack.c.b16 %v683, %v633
    %v784 = vpack.c.b16 %v684, %v634
    %v785 = vpack.c.b16 %v685, %v635
    %v786 = vpack.c.b16 %v686, %v636
    %v787 = vpack.c.b16 %v687, %v637
    %v788 = vpack.c.b16 %v688, %v638
    %v789 = vpack.c.b16 %v689, %v639
    %v790 = vpack.c.b16 %v690, %v640
    %v791 = vpack.c.b16 %v691, %v641
    %v792 = vpack.c.b16 %v692, %v642
    %v793 = vpack.c.b16 %v693, %v643
    %v794 = vpack.c.b16 %v694, %v644
    %v795 = vpack.c.b16 %v695, %v645
    %v796 = vpack.c.b16 %v696, %v646
    %v797 = vpack.c.b16 %v697, %v647
    %v798 = vpack.c.b16 %v698, %v648
    %v799 = vpack.c.b16 %v699, %v649
    %v800 = vpack.c.b16 %v700, %v650
    %v801 = vpack.c.b16 %v701, %v651
    %v802 = vpack.c.b16 %v702, %v652
    %v803 = vpack.c.b16 %v703, %v653
    %v804 = vpack.c.b16 %v704, %v654
    %v805 = vpack.c.b16 %v705, %v655
    %v806 = vpack.c.b16 %v706, %v656
    %vm857 = vcmask 203776
    %v859 = vsel %vm857, %v42, 0
    %vm861 = vcmask 1043456
    %vm862 = vcmask 1044480
    %v863 = vsel %vm861, 4294967295, 65535
    %v864 = vsel %vm862, %v863, 0
    %v866 = vand.u32 %v757, %v864
    %v869 = vand.u32 %v758, %v864
    %v872 = vand.u32 %v759, %v864
    %v875 = vand.u32 %v760, %v864
    %v878 = vand.u32 %v761, %v864
    %v881 = vand.u32 %v762, %v864
    %v884 = vand.u32 %v763, %v864
    %v887 = vand.u32 %v764, %v864
    %v890 = vand.u32 %v765, %v864
    %v893 = vand.u32 %v766, %v864
    %v896 = vand.u32 %v767, %v864
    %v899 = vand.u32 %v768, %v864
    %v902 = vand.u32 %v769, %v864
    %v905 = vand.u32 %v770, %v864
    %v908 = vand.u32 %v771, %v864
    %v911 = vand.u32 %v772, %v864
    %v914 = vand.u32 %v773, %v864
    %v917 = vand.u32 %v774, %v864
    %v920 = vand.u32 %v775, %v864
    %v923 = vand.u32 %v776, %v864
    %v926 = vand.u32 %v777, %v864
    %v929 = vand.u32 %v778, %v864
    %v932 = vand.u32 %v779, %v864
    %v935 = vand.u32 %v780, %v864
    %v938 = vand.u32 %v781, %v864
    %v941 = vand.u32 %v782, %v864
    %v944 = vand.u32 %v783, %v864
    %v947 = vand.u32 %v784, %v864
    %v950 = vand.u32 %v785, %v864
    %v953 = vand.u32 %v786, %v864
    %v956 = vand.u32 %v787, %v864
    %v959 = vand.u32 %v788, %v864
    %v962 = vand.u32 %v789, %v864
    %v965 = vand.u32 %v790, %v864
    %v968 = vand.u32 %v791, %v864
    %v971 = vand.u32 %v792, %v864
    %v974 = vand.u32 %v793, %v864
    %v977 = vand.u32 %v794, %v864
    %v980 = vand.u32 %v795, %v864
    %v983 = vand.u32 %v796, %v864
    %v986 = vand.u32 %v797, %v864
    %v989 = vand.u32 %v798, %v864
    %v992 = vand.u32 %v799, %v864
    %v995 = vand.u32 %v800, %v864
    %v998 = vand.u32 %v801, %v864
    %v1001 = vand.u32 %v802, %v864
    %v1004 = vand.u32 %v803, %v864
    %v1007 = vand.u32 %v804, %v864
    %v1010 = vand.u32 %v805, %v864
    %v1013 = vand.u32 %v806, %v864
    %1015 = vmatprep.subr.bf16.mxu0 0
    %1016 = vmatpush1.bf16.msra.mxu0 0
    %1017 = vmatprep.subr.bf16.mxu0 0
    %1018 = vmatpush1.bf16.msra.mxu0 0
    %1019 = vmatprep.subr.bf16.mxu0 0
    %1020 = vmatpush1.bf16.msra.mxu0 0
    %1021 = vmatprep.subr.bf16.mxu0 0
    %1022 = vmatpush1.bf16.msra.mxu0 0
    %1023 = vmatprep.subr.bf16.mxu0 0
    %1024 = vmatpush1.bf16.msra.mxu0 0
    %1025 = vmatprep.subr.bf16.mxu0 0
    %1026 = vmatpush1.bf16.msra.mxu0 0
    %1027 = vmatprep.subr.bf16.mxu0 %v869
    %1028 = vmatpush1.bf16.msra.mxu0 %v866
    %1029 = vmatprep.subr.bf16.mxu0 %v708
    %1030 = vmatpush1.bf16.msra.mxu0 %v707
    %1031 = vmatprep.subr.bf16.mxu0 0
    %1032 = vmatpush2.bf16.msra.mxu0 0
    %1033 = vmatprep.subr.bf16.mxu0 0
    %1034 = vmatpush2.bf16.msra.mxu0 0
    %1035 = vmatprep.subr.bf16.mxu0 0
    %1036 = vmatpush2.bf16.msra.mxu0 0
    %1037 = vmatprep.subr.bf16.mxu0 0
    %1038 = vmatpush2.bf16.msra.mxu0 0
    %1039 = vmatprep.subr.bf16.mxu0 0
    %1040 = vmatpush2.bf16.msra.mxu0 0
    %1041 = vmatprep.subr.bf16.mxu0 0
    %1042 = vmatpush2.bf16.msra.mxu0 0
    %1043 = vmatprep.subr.bf16.mxu0 0
    %1044 = vmatpush2.bf16.msra.mxu0 0
    %1045 = vmatprep.subr.bf16.mxu0 0
    %1046 = vmatpush2.bf16.msra.mxu0 0
    %1047 = vmatprep.mubr.bf16.mxu0 0
    %1048 = vmatmul.mubr.bf16.gmra.mxu0 %v859
    %v1049 = vpop.f32.mrf.mxu0
    %v1050 = vadd.f32 %v160, %v1049
    %v1051 = vpop.f32.mrf.mxu0
    %v1052 = vadd.f32 %v164, %v1051
    %v1053 = vpop.f32.mrf.mxu0
    %v1054 = vpop.f32.mrf.mxu0
    %1055 = vdwg.mxu0
    %1056 = vmatprep.subr.bf16.mxu0 0
    %1057 = vmatpush1.bf16.msra.mxu0 0
    %1058 = vmatprep.subr.bf16.mxu0 0
    %1059 = vmatpush1.bf16.msra.mxu0 0
    %1060 = vmatprep.subr.bf16.mxu0 0
    %1061 = vmatpush1.bf16.msra.mxu0 0
    %1062 = vmatprep.subr.bf16.mxu0 0
    %1063 = vmatpush1.bf16.msra.mxu0 0
    %1064 = vmatprep.subr.bf16.mxu0 0
    %1065 = vmatpush1.bf16.msra.mxu0 0
    %1066 = vmatprep.subr.bf16.mxu0 0
    %1067 = vmatpush1.bf16.msra.mxu0 0
    %1068 = vmatprep.subr.bf16.mxu0 %v875
    %1069 = vmatpush1.bf16.msra.mxu0 %v872
    %1070 = vmatprep.subr.bf16.mxu0 %v710
    %1071 = vmatpush1.bf16.msra.mxu0 %v709
    %1072 = vmatprep.subr.bf16.mxu0 0
    %1073 = vmatpush2.bf16.msra.mxu0 0
    %1074 = vmatprep.subr.bf16.mxu0 0
    %1075 = vmatpush2.bf16.msra.mxu0 0
    %1076 = vmatprep.subr.bf16.mxu0 0
    %1077 = vmatpush2.bf16.msra.mxu0 0
    %1078 = vmatprep.subr.bf16.mxu0 0
    %1079 = vmatpush2.bf16.msra.mxu0 0
    %1080 = vmatprep.subr.bf16.mxu0 0
    %1081 = vmatpush2.bf16.msra.mxu0 0
    %1082 = vmatprep.subr.bf16.mxu0 0
    %1083 = vmatpush2.bf16.msra.mxu0 0
    %1084 = vmatprep.subr.bf16.mxu0 0
    %1085 = vmatpush2.bf16.msra.mxu0 0
    %1086 = vmatprep.subr.bf16.mxu0 0
    %1087 = vmatpush2.bf16.msra.mxu0 0
    %1088 = vmatprep.mubr.bf16.mxu0 0
    %1089 = vmatmul.mubr.bf16.gmra.mxu0 %v859
    %v1090 = vpop.f32.mrf.mxu0
    %v1091 = vadd.f32 %v168, %v1090
    %v1092 = vpop.f32.mrf.mxu0
    %v1093 = vadd.f32 %v172, %v1092
    %v1094 = vpop.f32.mrf.mxu0
    %v1095 = vpop.f32.mrf.mxu0
    %1096 = vdwg.mxu0
    %1097 = vmatprep.subr.bf16.mxu0 0
    %1098 = vmatpush1.bf16.msra.mxu0 0
    %1099 = vmatprep.subr.bf16.mxu0 0
    %1100 = vmatpush1.bf16.msra.mxu0 0
    %1101 = vmatprep.subr.bf16.mxu0 0
    %1102 = vmatpush1.bf16.msra.mxu0 0
    %1103 = vmatprep.subr.bf16.mxu0 0
    %1104 = vmatpush1.bf16.msra.mxu0 0
    %1105 = vmatprep.subr.bf16.mxu0 0
    %1106 = vmatpush1.bf16.msra.mxu0 0
    %1107 = vmatprep.subr.bf16.mxu0 0
    %1108 = vmatpush1.bf16.msra.mxu0 0
    %1109 = vmatprep.subr.bf16.mxu0 %v881
    %1110 = vmatpush1.bf16.msra.mxu0 %v878
    %1111 = vmatprep.subr.bf16.mxu0 %v712
    %1112 = vmatpush1.bf16.msra.mxu0 %v711
    %1113 = vmatprep.subr.bf16.mxu0 0
    %1114 = vmatpush2.bf16.msra.mxu0 0
    %1115 = vmatprep.subr.bf16.mxu0 0
    %1116 = vmatpush2.bf16.msra.mxu0 0
    %1117 = vmatprep.subr.bf16.mxu0 0
    %1118 = vmatpush2.bf16.msra.mxu0 0
    %1119 = vmatprep.subr.bf16.mxu0 0
    %1120 = vmatpush2.bf16.msra.mxu0 0
    %1121 = vmatprep.subr.bf16.mxu0 0
    %1122 = vmatpush2.bf16.msra.mxu0 0
    %1123 = vmatprep.subr.bf16.mxu0 0
    %1124 = vmatpush2.bf16.msra.mxu0 0
    %1125 = vmatprep.subr.bf16.mxu0 0
    %1126 = vmatpush2.bf16.msra.mxu0 0
    %1127 = vmatprep.subr.bf16.mxu0 0
    %1128 = vmatpush2.bf16.msra.mxu0 0
    %1129 = vmatprep.mubr.bf16.mxu0 0
    %1130 = vmatmul.mubr.bf16.gmra.mxu0 %v859
    %v1131 = vpop.f32.mrf.mxu0
    %v1132 = vadd.f32 %v176, %v1131
    %v1133 = vpop.f32.mrf.mxu0
    %v1134 = vadd.f32 %v180, %v1133
    %v1135 = vpop.f32.mrf.mxu0
    %v1136 = vpop.f32.mrf.mxu0
    %1137 = vdwg.mxu0
    %1138 = vmatprep.subr.bf16.mxu0 0
    %1139 = vmatpush1.bf16.msra.mxu0 0
    %1140 = vmatprep.subr.bf16.mxu0 0
    %1141 = vmatpush1.bf16.msra.mxu0 0
    %1142 = vmatprep.subr.bf16.mxu0 0
    %1143 = vmatpush1.bf16.msra.mxu0 0
    %1144 = vmatprep.subr.bf16.mxu0 0
    %1145 = vmatpush1.bf16.msra.mxu0 0
    %1146 = vmatprep.subr.bf16.mxu0 0
    %1147 = vmatpush1.bf16.msra.mxu0 0
    %1148 = vmatprep.subr.bf16.mxu0 0
    %1149 = vmatpush1.bf16.msra.mxu0 0
    %1150 = vmatprep.subr.bf16.mxu0 %v887
    %1151 = vmatpush1.bf16.msra.mxu0 %v884
    %1152 = vmatprep.subr.bf16.mxu0 %v714
    %1153 = vmatpush1.bf16.msra.mxu0 %v713
    %1154 = vmatprep.subr.bf16.mxu0 0
    %1155 = vmatpush2.bf16.msra.mxu0 0
    %1156 = vmatprep.subr.bf16.mxu0 0
    %1157 = vmatpush2.bf16.msra.mxu0 0
    %1158 = vmatprep.subr.bf16.mxu0 0
    %1159 = vmatpush2.bf16.msra.mxu0 0
    %1160 = vmatprep.subr.bf16.mxu0 0
    %1161 = vmatpush2.bf16.msra.mxu0 0
    %1162 = vmatprep.subr.bf16.mxu0 0
    %1163 = vmatpush2.bf16.msra.mxu0 0
    %1164 = vmatprep.subr.bf16.mxu0 0
    %1165 = vmatpush2.bf16.msra.mxu0 0
    %1166 = vmatprep.subr.bf16.mxu0 0
    %1167 = vmatpush2.bf16.msra.mxu0 0
    %1168 = vmatprep.subr.bf16.mxu0 0
    %1169 = vmatpush2.bf16.msra.mxu0 0
    %1170 = vmatprep.mubr.bf16.mxu0 0
    %1171 = vmatmul.mubr.bf16.gmra.mxu0 %v859
    %v1172 = vpop.f32.mrf.mxu0
    %v1173 = vadd.f32 %v184, %v1172
    %v1174 = vpop.f32.mrf.mxu0
    %v1175 = vadd.f32 %v188, %v1174
    %v1176 = vpop.f32.mrf.mxu0
    %v1177 = vpop.f32.mrf.mxu0
    %1178 = vdwg.mxu0
    %1179 = vmatprep.subr.bf16.mxu0 0
    %1180 = vmatpush1.bf16.msra.mxu0 0
    %1181 = vmatprep.subr.bf16.mxu0 0
    %1182 = vmatpush1.bf16.msra.mxu0 0
    %1183 = vmatprep.subr.bf16.mxu0 0
    %1184 = vmatpush1.bf16.msra.mxu0 0
    %1185 = vmatprep.subr.bf16.mxu0 0
    %1186 = vmatpush1.bf16.msra.mxu0 0
    %1187 = vmatprep.subr.bf16.mxu0 0
    %1188 = vmatpush1.bf16.msra.mxu0 0
    %1189 = vmatprep.subr.bf16.mxu0 0
    %1190 = vmatpush1.bf16.msra.mxu0 0
    %1191 = vmatprep.subr.bf16.mxu0 %v893
    %1192 = vmatpush1.bf16.msra.mxu0 %v890
    %1193 = vmatprep.subr.bf16.mxu0 %v716
    %1194 = vmatpush1.bf16.msra.mxu0 %v715
    %1195 = vmatprep.subr.bf16.mxu0 0
    %1196 = vmatpush2.bf16.msra.mxu0 0
    %1197 = vmatprep.subr.bf16.mxu0 0
    %1198 = vmatpush2.bf16.msra.mxu0 0
    %1199 = vmatprep.subr.bf16.mxu0 0
    %1200 = vmatpush2.bf16.msra.mxu0 0
    %1201 = vmatprep.subr.bf16.mxu0 0
    %1202 = vmatpush2.bf16.msra.mxu0 0
    %1203 = vmatprep.subr.bf16.mxu0 0
    %1204 = vmatpush2.bf16.msra.mxu0 0
    %1205 = vmatprep.subr.bf16.mxu0 0
    %1206 = vmatpush2.bf16.msra.mxu0 0
    %1207 = vmatprep.subr.bf16.mxu0 0
    %1208 = vmatpush2.bf16.msra.mxu0 0
    %1209 = vmatprep.subr.bf16.mxu0 0
    %1210 = vmatpush2.bf16.msra.mxu0 0
    %1211 = vmatprep.mubr.bf16.mxu0 0
    %1212 = vmatmul.mubr.bf16.gmra.mxu0 %v859
    %v1213 = vpop.f32.mrf.mxu0
    %v1214 = vadd.f32 %v192, %v1213
    %v1215 = vpop.f32.mrf.mxu0
    %v1216 = vadd.f32 %v196, %v1215
    %v1217 = vpop.f32.mrf.mxu0
    %v1218 = vpop.f32.mrf.mxu0
    %1219 = vdwg.mxu0
    %1220 = vmatprep.subr.bf16.mxu0 0
    %1221 = vmatpush1.bf16.msra.mxu0 0
    %1222 = vmatprep.subr.bf16.mxu0 0
    %1223 = vmatpush1.bf16.msra.mxu0 0
    %1224 = vmatprep.subr.bf16.mxu0 0
    %1225 = vmatpush1.bf16.msra.mxu0 0
    %1226 = vmatprep.subr.bf16.mxu0 0
    %1227 = vmatpush1.bf16.msra.mxu0 0
    %1228 = vmatprep.subr.bf16.mxu0 0
    %1229 = vmatpush1.bf16.msra.mxu0 0
    %1230 = vmatprep.subr.bf16.mxu0 0
    %1231 = vmatpush1.bf16.msra.mxu0 0
    %1232 = vmatprep.subr.bf16.mxu0 %v899
    %1233 = vmatpush1.bf16.msra.mxu0 %v896
    %1234 = vmatprep.subr.bf16.mxu0 %v718
    %1235 = vmatpush1.bf16.msra.mxu0 %v717
    %1236 = vmatprep.subr.bf16.mxu0 0
    %1237 = vmatpush2.bf16.msra.mxu0 0
    %1238 = vmatprep.subr.bf16.mxu0 0
    %1239 = vmatpush2.bf16.msra.mxu0 0
    %1240 = vmatprep.subr.bf16.mxu0 0
    %1241 = vmatpush2.bf16.msra.mxu0 0
    %1242 = vmatprep.subr.bf16.mxu0 0
    %1243 = vmatpush2.bf16.msra.mxu0 0
    %1244 = vmatprep.subr.bf16.mxu0 0
    %1245 = vmatpush2.bf16.msra.mxu0 0
    %1246 = vmatprep.subr.bf16.mxu0 0
    %1247 = vmatpush2.bf16.msra.mxu0 0
    %1248 = vmatprep.subr.bf16.mxu0 0
    %1249 = vmatpush2.bf16.msra.mxu0 0
    %1250 = vmatprep.subr.bf16.mxu0 0
    %1251 = vmatpush2.bf16.msra.mxu0 0
    %1252 = vmatprep.mubr.bf16.mxu0 0
    %1253 = vmatmul.mubr.bf16.gmra.mxu0 %v859
    %v1254 = vpop.f32.mrf.mxu0
    %v1255 = vadd.f32 %v200, %v1254
    %v1256 = vpop.f32.mrf.mxu0
    %v1257 = vadd.f32 %v204, %v1256
    %v1258 = vpop.f32.mrf.mxu0
    %v1259 = vpop.f32.mrf.mxu0
    %1260 = vdwg.mxu0
    %1261 = vmatprep.subr.bf16.mxu0 0
    %1262 = vmatpush1.bf16.msra.mxu0 0
    %1263 = vmatprep.subr.bf16.mxu0 0
    %1264 = vmatpush1.bf16.msra.mxu0 0
    %1265 = vmatprep.subr.bf16.mxu0 0
    %1266 = vmatpush1.bf16.msra.mxu0 0
    %1267 = vmatprep.subr.bf16.mxu0 0
    %1268 = vmatpush1.bf16.msra.mxu0 0
    %1269 = vmatprep.subr.bf16.mxu0 0
    %1270 = vmatpush1.bf16.msra.mxu0 0
    %1271 = vmatprep.subr.bf16.mxu0 0
    %1272 = vmatpush1.bf16.msra.mxu0 0
    %1273 = vmatprep.subr.bf16.mxu0 %v905
    %1274 = vmatpush1.bf16.msra.mxu0 %v902
    %1275 = vmatprep.subr.bf16.mxu0 %v720
    %1276 = vmatpush1.bf16.msra.mxu0 %v719
    %1277 = vmatprep.subr.bf16.mxu0 0
    %1278 = vmatpush2.bf16.msra.mxu0 0
    %1279 = vmatprep.subr.bf16.mxu0 0
    %1280 = vmatpush2.bf16.msra.mxu0 0
    %1281 = vmatprep.subr.bf16.mxu0 0
    %1282 = vmatpush2.bf16.msra.mxu0 0
    %1283 = vmatprep.subr.bf16.mxu0 0
    %1284 = vmatpush2.bf16.msra.mxu0 0
    %1285 = vmatprep.subr.bf16.mxu0 0
    %1286 = vmatpush2.bf16.msra.mxu0 0
    %1287 = vmatprep.subr.bf16.mxu0 0
    %1288 = vmatpush2.bf16.msra.mxu0 0
    %1289 = vmatprep.subr.bf16.mxu0 0
    %1290 = vmatpush2.bf16.msra.mxu0 0
    %1291 = vmatprep.subr.bf16.mxu0 0
    %1292 = vmatpush2.bf16.msra.mxu0 0
    %1293 = vmatprep.mubr.bf16.mxu0 0
    %1294 = vmatmul.mubr.bf16.gmra.mxu0 %v859
    %v1295 = vpop.f32.mrf.mxu0
    %v1296 = vadd.f32 %v208, %v1295
    %v1297 = vpop.f32.mrf.mxu0
    %v1298 = vadd.f32 %v212, %v1297
    %v1299 = vpop.f32.mrf.mxu0
    %v1300 = vpop.f32.mrf.mxu0
    %1301 = vdwg.mxu0
    %1302 = vmatprep.subr.bf16.mxu0 0
    %1303 = vmatpush1.bf16.msra.mxu0 0
    %1304 = vmatprep.subr.bf16.mxu0 0
    %1305 = vmatpush1.bf16.msra.mxu0 0
    %1306 = vmatprep.subr.bf16.mxu0 0
    %1307 = vmatpush1.bf16.msra.mxu0 0
    %1308 = vmatprep.subr.bf16.mxu0 0
    %1309 = vmatpush1.bf16.msra.mxu0 0
    %1310 = vmatprep.subr.bf16.mxu0 0
    %1311 = vmatpush1.bf16.msra.mxu0 0
    %1312 = vmatprep.subr.bf16.mxu0 0
    %1313 = vmatpush1.bf16.msra.mxu0 0
    %1314 = vmatprep.subr.bf16.mxu0 %v911
    %1315 = vmatpush1.bf16.msra.mxu0 %v908
    %1316 = vmatprep.subr.bf16.mxu0 %v722
    %1317 = vmatpush1.bf16.msra.mxu0 %v721
    %1318 = vmatprep.subr.bf16.mxu0 0
    %1319 = vmatpush2.bf16.msra.mxu0 0
    %1320 = vmatprep.subr.bf16.mxu0 0
    %1321 = vmatpush2.bf16.msra.mxu0 0
    %1322 = vmatprep.subr.bf16.mxu0 0
    %1323 = vmatpush2.bf16.msra.mxu0 0
    %1324 = vmatprep.subr.bf16.mxu0 0
    %1325 = vmatpush2.bf16.msra.mxu0 0
    %1326 = vmatprep.subr.bf16.mxu0 0
    %1327 = vmatpush2.bf16.msra.mxu0 0
    %1328 = vmatprep.subr.bf16.mxu0 0
    %1329 = vmatpush2.bf16.msra.mxu0 0
    %1330 = vmatprep.subr.bf16.mxu0 0
    %1331 = vmatpush2.bf16.msra.mxu0 0
    %1332 = vmatprep.subr.bf16.mxu0 0
    %1333 = vmatpush2.bf16.msra.mxu0 0
    %1334 = vmatprep.mubr.bf16.mxu0 0
    %1335 = vmatmul.mubr.bf16.gmra.mxu0 %v859
    %v1336 = vpop.f32.mrf.mxu0
    %v1337 = vadd.f32 %v216, %v1336
    %v1338 = vpop.f32.mrf.mxu0
    %v1339 = vadd.f32 %v220, %v1338
    %v1340 = vpop.f32.mrf.mxu0
    %v1341 = vpop.f32.mrf.mxu0
    %1342 = vdwg.mxu0
    %1343 = vmatprep.subr.bf16.mxu0 0
    %1344 = vmatpush1.bf16.msra.mxu0 0
    %1345 = vmatprep.subr.bf16.mxu0 0
    %1346 = vmatpush1.bf16.msra.mxu0 0
    %1347 = vmatprep.subr.bf16.mxu0 0
    %1348 = vmatpush1.bf16.msra.mxu0 0
    %1349 = vmatprep.subr.bf16.mxu0 0
    %1350 = vmatpush1.bf16.msra.mxu0 0
    %1351 = vmatprep.subr.bf16.mxu0 0
    %1352 = vmatpush1.bf16.msra.mxu0 0
    %1353 = vmatprep.subr.bf16.mxu0 0
    %1354 = vmatpush1.bf16.msra.mxu0 0
    %1355 = vmatprep.subr.bf16.mxu0 %v917
    %1356 = vmatpush1.bf16.msra.mxu0 %v914
    %1357 = vmatprep.subr.bf16.mxu0 %v724
    %1358 = vmatpush1.bf16.msra.mxu0 %v723
    %1359 = vmatprep.subr.bf16.mxu0 0
    %1360 = vmatpush2.bf16.msra.mxu0 0
    %1361 = vmatprep.subr.bf16.mxu0 0
    %1362 = vmatpush2.bf16.msra.mxu0 0
    %1363 = vmatprep.subr.bf16.mxu0 0
    %1364 = vmatpush2.bf16.msra.mxu0 0
    %1365 = vmatprep.subr.bf16.mxu0 0
    %1366 = vmatpush2.bf16.msra.mxu0 0
    %1367 = vmatprep.subr.bf16.mxu0 0
    %1368 = vmatpush2.bf16.msra.mxu0 0
    %1369 = vmatprep.subr.bf16.mxu0 0
    %1370 = vmatpush2.bf16.msra.mxu0 0
    %1371 = vmatprep.subr.bf16.mxu0 0
    %1372 = vmatpush2.bf16.msra.mxu0 0
    %1373 = vmatprep.subr.bf16.mxu0 0
    %1374 = vmatpush2.bf16.msra.mxu0 0
    %1375 = vmatprep.mubr.bf16.mxu0 0
    %1376 = vmatmul.mubr.bf16.gmra.mxu0 %v859
    %v1377 = vpop.f32.mrf.mxu0
    %v1378 = vadd.f32 %v224, %v1377
    %v1379 = vpop.f32.mrf.mxu0
    %v1380 = vadd.f32 %v228, %v1379
    %v1381 = vpop.f32.mrf.mxu0
    %v1382 = vpop.f32.mrf.mxu0
    %1383 = vdwg.mxu0
    %1384 = vmatprep.subr.bf16.mxu0 0
    %1385 = vmatpush1.bf16.msra.mxu0 0
    %1386 = vmatprep.subr.bf16.mxu0 0
    %1387 = vmatpush1.bf16.msra.mxu0 0
    %1388 = vmatprep.subr.bf16.mxu0 0
    %1389 = vmatpush1.bf16.msra.mxu0 0
    %1390 = vmatprep.subr.bf16.mxu0 0
    %1391 = vmatpush1.bf16.msra.mxu0 0
    %1392 = vmatprep.subr.bf16.mxu0 0
    %1393 = vmatpush1.bf16.msra.mxu0 0
    %1394 = vmatprep.subr.bf16.mxu0 0
    %1395 = vmatpush1.bf16.msra.mxu0 0
    %1396 = vmatprep.subr.bf16.mxu0 %v923
    %1397 = vmatpush1.bf16.msra.mxu0 %v920
    %1398 = vmatprep.subr.bf16.mxu0 %v726
    %1399 = vmatpush1.bf16.msra.mxu0 %v725
    %1400 = vmatprep.subr.bf16.mxu0 0
    %1401 = vmatpush2.bf16.msra.mxu0 0
    %1402 = vmatprep.subr.bf16.mxu0 0
    %1403 = vmatpush2.bf16.msra.mxu0 0
    %1404 = vmatprep.subr.bf16.mxu0 0
    %1405 = vmatpush2.bf16.msra.mxu0 0
    %1406 = vmatprep.subr.bf16.mxu0 0
    %1407 = vmatpush2.bf16.msra.mxu0 0
    %1408 = vmatprep.subr.bf16.mxu0 0
    %1409 = vmatpush2.bf16.msra.mxu0 0
    %1410 = vmatprep.subr.bf16.mxu0 0
    %1411 = vmatpush2.bf16.msra.mxu0 0
    %1412 = vmatprep.subr.bf16.mxu0 0
    %1413 = vmatpush2.bf16.msra.mxu0 0
    %1414 = vmatprep.subr.bf16.mxu0 0
    %1415 = vmatpush2.bf16.msra.mxu0 0
    %1416 = vmatprep.mubr.bf16.mxu0 0
    %1417 = vmatmul.mubr.bf16.gmra.mxu0 %v859
    %v1418 = vpop.f32.mrf.mxu0
    %v1419 = vadd.f32 %v232, %v1418
    %v1420 = vpop.f32.mrf.mxu0
    %v1421 = vadd.f32 %v236, %v1420
    %v1422 = vpop.f32.mrf.mxu0
    %v1423 = vpop.f32.mrf.mxu0
    %1424 = vdwg.mxu0
    %1425 = vmatprep.subr.bf16.mxu0 0
    %1426 = vmatpush1.bf16.msra.mxu0 0
    %1427 = vmatprep.subr.bf16.mxu0 0
    %1428 = vmatpush1.bf16.msra.mxu0 0
    %1429 = vmatprep.subr.bf16.mxu0 0
    %1430 = vmatpush1.bf16.msra.mxu0 0
    %1431 = vmatprep.subr.bf16.mxu0 0
    %1432 = vmatpush1.bf16.msra.mxu0 0
    %1433 = vmatprep.subr.bf16.mxu0 0
    %1434 = vmatpush1.bf16.msra.mxu0 0
    %1435 = vmatprep.subr.bf16.mxu0 0
    %1436 = vmatpush1.bf16.msra.mxu0 0
    %1437 = vmatprep.subr.bf16.mxu0 %v929
    %1438 = vmatpush1.bf16.msra.mxu0 %v926
    %1439 = vmatprep.subr.bf16.mxu0 %v728
    %1440 = vmatpush1.bf16.msra.mxu0 %v727
    %1441 = vmatprep.subr.bf16.mxu0 0
    %1442 = vmatpush2.bf16.msra.mxu0 0
    %1443 = vmatprep.subr.bf16.mxu0 0
    %1444 = vmatpush2.bf16.msra.mxu0 0
    %1445 = vmatprep.subr.bf16.mxu0 0
    %1446 = vmatpush2.bf16.msra.mxu0 0
    %1447 = vmatprep.subr.bf16.mxu0 0
    %1448 = vmatpush2.bf16.msra.mxu0 0
    %1449 = vmatprep.subr.bf16.mxu0 0
    %1450 = vmatpush2.bf16.msra.mxu0 0
    %1451 = vmatprep.subr.bf16.mxu0 0
    %1452 = vmatpush2.bf16.msra.mxu0 0
    %1453 = vmatprep.subr.bf16.mxu0 0
    %1454 = vmatpush2.bf16.msra.mxu0 0
    %1455 = vmatprep.subr.bf16.mxu0 0
    %1456 = vmatpush2.bf16.msra.mxu0 0
    %1457 = vmatprep.mubr.bf16.mxu0 0
    %1458 = vmatmul.mubr.bf16.gmra.mxu0 %v859
    %v1459 = vpop.f32.mrf.mxu0
    %v1460 = vadd.f32 %v240, %v1459
    %v1461 = vpop.f32.mrf.mxu0
    %v1462 = vadd.f32 %v244, %v1461
    %v1463 = vpop.f32.mrf.mxu0
    %v1464 = vpop.f32.mrf.mxu0
    %1465 = vdwg.mxu0
    %1466 = vmatprep.subr.bf16.mxu0 0
    %1467 = vmatpush1.bf16.msra.mxu0 0
    %1468 = vmatprep.subr.bf16.mxu0 0
    %1469 = vmatpush1.bf16.msra.mxu0 0
    %1470 = vmatprep.subr.bf16.mxu0 0
    %1471 = vmatpush1.bf16.msra.mxu0 0
    %1472 = vmatprep.subr.bf16.mxu0 0
    %1473 = vmatpush1.bf16.msra.mxu0 0
    %1474 = vmatprep.subr.bf16.mxu0 0
    %1475 = vmatpush1.bf16.msra.mxu0 0
    %1476 = vmatprep.subr.bf16.mxu0 0
    %1477 = vmatpush1.bf16.msra.mxu0 0
    %1478 = vmatprep.subr.bf16.mxu0 %v935
    %1479 = vmatpush1.bf16.msra.mxu0 %v932
    %1480 = vmatprep.subr.bf16.mxu0 %v730
    %1481 = vmatpush1.bf16.msra.mxu0 %v729
    %1482 = vmatprep.subr.bf16.mxu0 0
    %1483 = vmatpush2.bf16.msra.mxu0 0
    %1484 = vmatprep.subr.bf16.mxu0 0
    %1485 = vmatpush2.bf16.msra.mxu0 0
    %1486 = vmatprep.subr.bf16.mxu0 0
    %1487 = vmatpush2.bf16.msra.mxu0 0
    %1488 = vmatprep.subr.bf16.mxu0 0
    %1489 = vmatpush2.bf16.msra.mxu0 0
    %1490 = vmatprep.subr.bf16.mxu0 0
    %1491 = vmatpush2.bf16.msra.mxu0 0
    %1492 = vmatprep.subr.bf16.mxu0 0
    %1493 = vmatpush2.bf16.msra.mxu0 0
    %1494 = vmatprep.subr.bf16.mxu0 0
    %1495 = vmatpush2.bf16.msra.mxu0 0
    %1496 = vmatprep.subr.bf16.mxu0 0
    %1497 = vmatpush2.bf16.msra.mxu0 0
    %1498 = vmatprep.mubr.bf16.mxu0 0
    %1499 = vmatmul.mubr.bf16.gmra.mxu0 %v859
    %v1500 = vpop.f32.mrf.mxu0
    %v1501 = vadd.f32 %v248, %v1500
    %v1502 = vpop.f32.mrf.mxu0
    %v1503 = vadd.f32 %v252, %v1502
    %v1504 = vpop.f32.mrf.mxu0
    %v1505 = vpop.f32.mrf.mxu0
    %1506 = vdwg.mxu0
    %1507 = vmatprep.subr.bf16.mxu0 0
    %1508 = vmatpush1.bf16.msra.mxu0 0
    %1509 = vmatprep.subr.bf16.mxu0 0
    %1510 = vmatpush1.bf16.msra.mxu0 0
    %1511 = vmatprep.subr.bf16.mxu0 0
    %1512 = vmatpush1.bf16.msra.mxu0 0
    %1513 = vmatprep.subr.bf16.mxu0 0
    %1514 = vmatpush1.bf16.msra.mxu0 0
    %1515 = vmatprep.subr.bf16.mxu0 0
    %1516 = vmatpush1.bf16.msra.mxu0 0
    %1517 = vmatprep.subr.bf16.mxu0 0
    %1518 = vmatpush1.bf16.msra.mxu0 0
    %1519 = vmatprep.subr.bf16.mxu0 %v941
    %1520 = vmatpush1.bf16.msra.mxu0 %v938
    %1521 = vmatprep.subr.bf16.mxu0 %v732
    %1522 = vmatpush1.bf16.msra.mxu0 %v731
    %1523 = vmatprep.subr.bf16.mxu0 0
    %1524 = vmatpush2.bf16.msra.mxu0 0
    %1525 = vmatprep.subr.bf16.mxu0 0
    %1526 = vmatpush2.bf16.msra.mxu0 0
    %1527 = vmatprep.subr.bf16.mxu0 0
    %1528 = vmatpush2.bf16.msra.mxu0 0
    %1529 = vmatprep.subr.bf16.mxu0 0
    %1530 = vmatpush2.bf16.msra.mxu0 0
    %1531 = vmatprep.subr.bf16.mxu0 0
    %1532 = vmatpush2.bf16.msra.mxu0 0
    %1533 = vmatprep.subr.bf16.mxu0 0
    %1534 = vmatpush2.bf16.msra.mxu0 0
    %1535 = vmatprep.subr.bf16.mxu0 0
    %1536 = vmatpush2.bf16.msra.mxu0 0
    %1537 = vmatprep.subr.bf16.mxu0 0
    %1538 = vmatpush2.bf16.msra.mxu0 0
    %1539 = vmatprep.mubr.bf16.mxu0 0
    %1540 = vmatmul.mubr.bf16.gmra.mxu0 %v859
    %v1541 = vpop.f32.mrf.mxu0
    %v1542 = vadd.f32 %v256, %v1541
    %v1543 = vpop.f32.mrf.mxu0
    %v1544 = vadd.f32 %v260, %v1543
    %v1545 = vpop.f32.mrf.mxu0
    %v1546 = vpop.f32.mrf.mxu0
    %1547 = vdwg.mxu0
    %1548 = vmatprep.subr.bf16.mxu0 0
    %1549 = vmatpush1.bf16.msra.mxu0 0
    %1550 = vmatprep.subr.bf16.mxu0 0
    %1551 = vmatpush1.bf16.msra.mxu0 0
    %1552 = vmatprep.subr.bf16.mxu0 0
    %1553 = vmatpush1.bf16.msra.mxu0 0
    %1554 = vmatprep.subr.bf16.mxu0 0
    %1555 = vmatpush1.bf16.msra.mxu0 0
    %1556 = vmatprep.subr.bf16.mxu0 0
    %1557 = vmatpush1.bf16.msra.mxu0 0
    %1558 = vmatprep.subr.bf16.mxu0 0
    %1559 = vmatpush1.bf16.msra.mxu0 0
    %1560 = vmatprep.subr.bf16.mxu0 %v947
    %1561 = vmatpush1.bf16.msra.mxu0 %v944
    %1562 = vmatprep.subr.bf16.mxu0 %v734
    %1563 = vmatpush1.bf16.msra.mxu0 %v733
    %1564 = vmatprep.subr.bf16.mxu0 0
    %1565 = vmatpush2.bf16.msra.mxu0 0
    %1566 = vmatprep.subr.bf16.mxu0 0
    %1567 = vmatpush2.bf16.msra.mxu0 0
    %1568 = vmatprep.subr.bf16.mxu0 0
    %1569 = vmatpush2.bf16.msra.mxu0 0
    %1570 = vmatprep.subr.bf16.mxu0 0
    %1571 = vmatpush2.bf16.msra.mxu0 0
    %1572 = vmatprep.subr.bf16.mxu0 0
    %1573 = vmatpush2.bf16.msra.mxu0 0
    %1574 = vmatprep.subr.bf16.mxu0 0
    %1575 = vmatpush2.bf16.msra.mxu0 0
    %1576 = vmatprep.subr.bf16.mxu0 0
    %1577 = vmatpush2.bf16.msra.mxu0 0
    %1578 = vmatprep.subr.bf16.mxu0 0
    %1579 = vmatpush2.bf16.msra.mxu0 0
    %1580 = vmatprep.mubr.bf16.mxu0 0
    %1581 = vmatmul.mubr.bf16.gmra.mxu0 %v859
    %v1582 = vpop.f32.mrf.mxu0
    %v1583 = vadd.f32 %v264, %v1582
    %v1584 = vpop.f32.mrf.mxu0
    %v1585 = vadd.f32 %v268, %v1584
    %v1586 = vpop.f32.mrf.mxu0
    %v1587 = vpop.f32.mrf.mxu0
    %1588 = vdwg.mxu0
    %1589 = vmatprep.subr.bf16.mxu0 0
    %1590 = vmatpush1.bf16.msra.mxu0 0
    %1591 = vmatprep.subr.bf16.mxu0 0
    %1592 = vmatpush1.bf16.msra.mxu0 0
    %1593 = vmatprep.subr.bf16.mxu0 0
    %1594 = vmatpush1.bf16.msra.mxu0 0
    %1595 = vmatprep.subr.bf16.mxu0 0
    %1596 = vmatpush1.bf16.msra.mxu0 0
    %1597 = vmatprep.subr.bf16.mxu0 0
    %1598 = vmatpush1.bf16.msra.mxu0 0
    %1599 = vmatprep.subr.bf16.mxu0 0
    %1600 = vmatpush1.bf16.msra.mxu0 0
    %1601 = vmatprep.subr.bf16.mxu0 %v953
    %1602 = vmatpush1.bf16.msra.mxu0 %v950
    %1603 = vmatprep.subr.bf16.mxu0 %v736
    %1604 = vmatpush1.bf16.msra.mxu0 %v735
    %1605 = vmatprep.subr.bf16.mxu0 0
    %1606 = vmatpush2.bf16.msra.mxu0 0
    %1607 = vmatprep.subr.bf16.mxu0 0
    %1608 = vmatpush2.bf16.msra.mxu0 0
    %1609 = vmatprep.subr.bf16.mxu0 0
    %1610 = vmatpush2.bf16.msra.mxu0 0
    %1611 = vmatprep.subr.bf16.mxu0 0
    %1612 = vmatpush2.bf16.msra.mxu0 0
    %1613 = vmatprep.subr.bf16.mxu0 0
    %1614 = vmatpush2.bf16.msra.mxu0 0
    %1615 = vmatprep.subr.bf16.mxu0 0
    %1616 = vmatpush2.bf16.msra.mxu0 0
    %1617 = vmatprep.subr.bf16.mxu0 0
    %1618 = vmatpush2.bf16.msra.mxu0 0
    %1619 = vmatprep.subr.bf16.mxu0 0
    %1620 = vmatpush2.bf16.msra.mxu0 0
    %1621 = vmatprep.mubr.bf16.mxu0 0
    %1622 = vmatmul.mubr.bf16.gmra.mxu0 %v859
    %v1623 = vpop.f32.mrf.mxu0
    %v1624 = vadd.f32 %v272, %v1623
    %v1625 = vpop.f32.mrf.mxu0
    %v1626 = vadd.f32 %v276, %v1625
    %v1627 = vpop.f32.mrf.mxu0
    %v1628 = vpop.f32.mrf.mxu0
    %1629 = vdwg.mxu0
    %1630 = vmatprep.subr.bf16.mxu0 0
    %1631 = vmatpush1.bf16.msra.mxu0 0
    %1632 = vmatprep.subr.bf16.mxu0 0
    %1633 = vmatpush1.bf16.msra.mxu0 0
    %1634 = vmatprep.subr.bf16.mxu0 0
    %1635 = vmatpush1.bf16.msra.mxu0 0
    %1636 = vmatprep.subr.bf16.mxu0 0
    %1637 = vmatpush1.bf16.msra.mxu0 0
    %1638 = vmatprep.subr.bf16.mxu0 0
    %1639 = vmatpush1.bf16.msra.mxu0 0
    %1640 = vmatprep.subr.bf16.mxu0 0
    %1641 = vmatpush1.bf16.msra.mxu0 0
    %1642 = vmatprep.subr.bf16.mxu0 %v959
    %1643 = vmatpush1.bf16.msra.mxu0 %v956
    %1644 = vmatprep.subr.bf16.mxu0 %v738
    %1645 = vmatpush1.bf16.msra.mxu0 %v737
    %1646 = vmatprep.subr.bf16.mxu0 0
    %1647 = vmatpush2.bf16.msra.mxu0 0
    %1648 = vmatprep.subr.bf16.mxu0 0
    %1649 = vmatpush2.bf16.msra.mxu0 0
    %1650 = vmatprep.subr.bf16.mxu0 0
    %1651 = vmatpush2.bf16.msra.mxu0 0
    %1652 = vmatprep.subr.bf16.mxu0 0
    %1653 = vmatpush2.bf16.msra.mxu0 0
    %1654 = vmatprep.subr.bf16.mxu0 0
    %1655 = vmatpush2.bf16.msra.mxu0 0
    %1656 = vmatprep.subr.bf16.mxu0 0
    %1657 = vmatpush2.bf16.msra.mxu0 0
    %1658 = vmatprep.subr.bf16.mxu0 0
    %1659 = vmatpush2.bf16.msra.mxu0 0
    %1660 = vmatprep.subr.bf16.mxu0 0
    %1661 = vmatpush2.bf16.msra.mxu0 0
    %1662 = vmatprep.mubr.bf16.mxu0 0
    %1663 = vmatmul.mubr.bf16.gmra.mxu0 %v859
    %v1664 = vpop.f32.mrf.mxu0
    %v1665 = vadd.f32 %v280, %v1664
    %v1666 = vpop.f32.mrf.mxu0
    %v1667 = vadd.f32 %v284, %v1666
    %v1668 = vpop.f32.mrf.mxu0
    %v1669 = vpop.f32.mrf.mxu0
    %1670 = vdwg.mxu0
    %1671 = vmatprep.subr.bf16.mxu0 0
    %1672 = vmatpush1.bf16.msra.mxu0 0
    %1673 = vmatprep.subr.bf16.mxu0 0
    %1674 = vmatpush1.bf16.msra.mxu0 0
    %1675 = vmatprep.subr.bf16.mxu0 0
    %1676 = vmatpush1.bf16.msra.mxu0 0
    %1677 = vmatprep.subr.bf16.mxu0 0
    %1678 = vmatpush1.bf16.msra.mxu0 0
    %1679 = vmatprep.subr.bf16.mxu0 0
    %1680 = vmatpush1.bf16.msra.mxu0 0
    %1681 = vmatprep.subr.bf16.mxu0 0
    %1682 = vmatpush1.bf16.msra.mxu0 0
    %1683 = vmatprep.subr.bf16.mxu0 %v965
    %1684 = vmatpush1.bf16.msra.mxu0 %v962
    %1685 = vmatprep.subr.bf16.mxu0 %v740
    %1686 = vmatpush1.bf16.msra.mxu0 %v739
    %1687 = vmatprep.subr.bf16.mxu0 0
    %1688 = vmatpush2.bf16.msra.mxu0 0
    %1689 = vmatprep.subr.bf16.mxu0 0
    %1690 = vmatpush2.bf16.msra.mxu0 0
    %1691 = vmatprep.subr.bf16.mxu0 0
    %1692 = vmatpush2.bf16.msra.mxu0 0
    %1693 = vmatprep.subr.bf16.mxu0 0
    %1694 = vmatpush2.bf16.msra.mxu0 0
    %1695 = vmatprep.subr.bf16.mxu0 0
    %1696 = vmatpush2.bf16.msra.mxu0 0
    %1697 = vmatprep.subr.bf16.mxu0 0
    %1698 = vmatpush2.bf16.msra.mxu0 0
    %1699 = vmatprep.subr.bf16.mxu0 0
    %1700 = vmatpush2.bf16.msra.mxu0 0
    %1701 = vmatprep.subr.bf16.mxu0 0
    %1702 = vmatpush2.bf16.msra.mxu0 0
    %1703 = vmatprep.mubr.bf16.mxu0 0
    %1704 = vmatmul.mubr.bf16.gmra.mxu0 %v859
    %v1705 = vpop.f32.mrf.mxu0
    %v1706 = vadd.f32 %v288, %v1705
    %v1707 = vpop.f32.mrf.mxu0
    %v1708 = vadd.f32 %v292, %v1707
    %v1709 = vpop.f32.mrf.mxu0
    %v1710 = vpop.f32.mrf.mxu0
    %1711 = vdwg.mxu0
    %1712 = vmatprep.subr.bf16.mxu0 0
    %1713 = vmatpush1.bf16.msra.mxu0 0
    %1714 = vmatprep.subr.bf16.mxu0 0
    %1715 = vmatpush1.bf16.msra.mxu0 0
    %1716 = vmatprep.subr.bf16.mxu0 0
    %1717 = vmatpush1.bf16.msra.mxu0 0
    %1718 = vmatprep.subr.bf16.mxu0 0
    %1719 = vmatpush1.bf16.msra.mxu0 0
    %1720 = vmatprep.subr.bf16.mxu0 0
    %1721 = vmatpush1.bf16.msra.mxu0 0
    %1722 = vmatprep.subr.bf16.mxu0 0
    %1723 = vmatpush1.bf16.msra.mxu0 0
    %1724 = vmatprep.subr.bf16.mxu0 %v971
    %1725 = vmatpush1.bf16.msra.mxu0 %v968
    %1726 = vmatprep.subr.bf16.mxu0 %v742
    %1727 = vmatpush1.bf16.msra.mxu0 %v741
    %1728 = vmatprep.subr.bf16.mxu0 0
    %1729 = vmatpush2.bf16.msra.mxu0 0
    %1730 = vmatprep.subr.bf16.mxu0 0
    %1731 = vmatpush2.bf16.msra.mxu0 0
    %1732 = vmatprep.subr.bf16.mxu0 0
    %1733 = vmatpush2.bf16.msra.mxu0 0
    %1734 = vmatprep.subr.bf16.mxu0 0
    %1735 = vmatpush2.bf16.msra.mxu0 0
    %1736 = vmatprep.subr.bf16.mxu0 0
    %1737 = vmatpush2.bf16.msra.mxu0 0
    %1738 = vmatprep.subr.bf16.mxu0 0
    %1739 = vmatpush2.bf16.msra.mxu0 0
    %1740 = vmatprep.subr.bf16.mxu0 0
    %1741 = vmatpush2.bf16.msra.mxu0 0
    %1742 = vmatprep.subr.bf16.mxu0 0
    %1743 = vmatpush2.bf16.msra.mxu0 0
    %1744 = vmatprep.mubr.bf16.mxu0 0
    %1745 = vmatmul.mubr.bf16.gmra.mxu0 %v859
    %v1746 = vpop.f32.mrf.mxu0
    %v1747 = vadd.f32 %v296, %v1746
    %v1748 = vpop.f32.mrf.mxu0
    %v1749 = vadd.f32 %v300, %v1748
    %v1750 = vpop.f32.mrf.mxu0
    %v1751 = vpop.f32.mrf.mxu0
    %1752 = vdwg.mxu0
    %1753 = vmatprep.subr.bf16.mxu0 0
    %1754 = vmatpush1.bf16.msra.mxu0 0
    %1755 = vmatprep.subr.bf16.mxu0 0
    %1756 = vmatpush1.bf16.msra.mxu0 0
    %1757 = vmatprep.subr.bf16.mxu0 0
    %1758 = vmatpush1.bf16.msra.mxu0 0
    %1759 = vmatprep.subr.bf16.mxu0 0
    %1760 = vmatpush1.bf16.msra.mxu0 0
    %1761 = vmatprep.subr.bf16.mxu0 0
    %1762 = vmatpush1.bf16.msra.mxu0 0
    %1763 = vmatprep.subr.bf16.mxu0 0
    %1764 = vmatpush1.bf16.msra.mxu0 0
    %1765 = vmatprep.subr.bf16.mxu0 %v977
    %1766 = vmatpush1.bf16.msra.mxu0 %v974
    %1767 = vmatprep.subr.bf16.mxu0 %v744
    %1768 = vmatpush1.bf16.msra.mxu0 %v743
    %1769 = vmatprep.subr.bf16.mxu0 0
    %1770 = vmatpush2.bf16.msra.mxu0 0
    %1771 = vmatprep.subr.bf16.mxu0 0
    %1772 = vmatpush2.bf16.msra.mxu0 0
    %1773 = vmatprep.subr.bf16.mxu0 0
    %1774 = vmatpush2.bf16.msra.mxu0 0
    %1775 = vmatprep.subr.bf16.mxu0 0
    %1776 = vmatpush2.bf16.msra.mxu0 0
    %1777 = vmatprep.subr.bf16.mxu0 0
    %1778 = vmatpush2.bf16.msra.mxu0 0
    %1779 = vmatprep.subr.bf16.mxu0 0
    %1780 = vmatpush2.bf16.msra.mxu0 0
    %1781 = vmatprep.subr.bf16.mxu0 0
    %1782 = vmatpush2.bf16.msra.mxu0 0
    %1783 = vmatprep.subr.bf16.mxu0 0
    %1784 = vmatpush2.bf16.msra.mxu0 0
    %1785 = vmatprep.mubr.bf16.mxu0 0
    %1786 = vmatmul.mubr.bf16.gmra.mxu0 %v859
    %v1787 = vpop.f32.mrf.mxu0
    %v1788 = vadd.f32 %v304, %v1787
    %v1789 = vpop.f32.mrf.mxu0
    %v1790 = vadd.f32 %v308, %v1789
    %v1791 = vpop.f32.mrf.mxu0
    %v1792 = vpop.f32.mrf.mxu0
    %1793 = vdwg.mxu0
    %1794 = vmatprep.subr.bf16.mxu0 0
    %1795 = vmatpush1.bf16.msra.mxu0 0
    %1796 = vmatprep.subr.bf16.mxu0 0
    %1797 = vmatpush1.bf16.msra.mxu0 0
    %1798 = vmatprep.subr.bf16.mxu0 0
    %1799 = vmatpush1.bf16.msra.mxu0 0
    %1800 = vmatprep.subr.bf16.mxu0 0
    %1801 = vmatpush1.bf16.msra.mxu0 0
    %1802 = vmatprep.subr.bf16.mxu0 0
    %1803 = vmatpush1.bf16.msra.mxu0 0
    %1804 = vmatprep.subr.bf16.mxu0 0
    %1805 = vmatpush1.bf16.msra.mxu0 0
    %1806 = vmatprep.subr.bf16.mxu0 %v983
    %1807 = vmatpush1.bf16.msra.mxu0 %v980
    %1808 = vmatprep.subr.bf16.mxu0 %v746
    %1809 = vmatpush1.bf16.msra.mxu0 %v745
    %1810 = vmatprep.subr.bf16.mxu0 0
    %1811 = vmatpush2.bf16.msra.mxu0 0
    %1812 = vmatprep.subr.bf16.mxu0 0
    %1813 = vmatpush2.bf16.msra.mxu0 0
    %1814 = vmatprep.subr.bf16.mxu0 0
    %1815 = vmatpush2.bf16.msra.mxu0 0
    %1816 = vmatprep.subr.bf16.mxu0 0
    %1817 = vmatpush2.bf16.msra.mxu0 0
    %1818 = vmatprep.subr.bf16.mxu0 0
    %1819 = vmatpush2.bf16.msra.mxu0 0
    %1820 = vmatprep.subr.bf16.mxu0 0
    %1821 = vmatpush2.bf16.msra.mxu0 0
    %1822 = vmatprep.subr.bf16.mxu0 0
    %1823 = vmatpush2.bf16.msra.mxu0 0
    %1824 = vmatprep.subr.bf16.mxu0 0
    %1825 = vmatpush2.bf16.msra.mxu0 0
    %1826 = vmatprep.mubr.bf16.mxu0 0
    %1827 = vmatmul.mubr.bf16.gmra.mxu0 %v859
    %v1828 = vpop.f32.mrf.mxu0
    %v1829 = vadd.f32 %v312, %v1828
    %v1830 = vpop.f32.mrf.mxu0
    %v1831 = vadd.f32 %v316, %v1830
    %v1832 = vpop.f32.mrf.mxu0
    %v1833 = vpop.f32.mrf.mxu0
    %1834 = vdwg.mxu0
    %1835 = vmatprep.subr.bf16.mxu0 0
    %1836 = vmatpush1.bf16.msra.mxu0 0
    %1837 = vmatprep.subr.bf16.mxu0 0
    %1838 = vmatpush1.bf16.msra.mxu0 0
    %1839 = vmatprep.subr.bf16.mxu0 0
    %1840 = vmatpush1.bf16.msra.mxu0 0
    %1841 = vmatprep.subr.bf16.mxu0 0
    %1842 = vmatpush1.bf16.msra.mxu0 0
    %1843 = vmatprep.subr.bf16.mxu0 0
    %1844 = vmatpush1.bf16.msra.mxu0 0
    %1845 = vmatprep.subr.bf16.mxu0 0
    %1846 = vmatpush1.bf16.msra.mxu0 0
    %1847 = vmatprep.subr.bf16.mxu0 %v989
    %1848 = vmatpush1.bf16.msra.mxu0 %v986
    %1849 = vmatprep.subr.bf16.mxu0 %v748
    %1850 = vmatpush1.bf16.msra.mxu0 %v747
    %1851 = vmatprep.subr.bf16.mxu0 0
    %1852 = vmatpush2.bf16.msra.mxu0 0
    %1853 = vmatprep.subr.bf16.mxu0 0
    %1854 = vmatpush2.bf16.msra.mxu0 0
    %1855 = vmatprep.subr.bf16.mxu0 0
    %1856 = vmatpush2.bf16.msra.mxu0 0
    %1857 = vmatprep.subr.bf16.mxu0 0
    %1858 = vmatpush2.bf16.msra.mxu0 0
    %1859 = vmatprep.subr.bf16.mxu0 0
    %1860 = vmatpush2.bf16.msra.mxu0 0
    %1861 = vmatprep.subr.bf16.mxu0 0
    %1862 = vmatpush2.bf16.msra.mxu0 0
    %1863 = vmatprep.subr.bf16.mxu0 0
    %1864 = vmatpush2.bf16.msra.mxu0 0
    %1865 = vmatprep.subr.bf16.mxu0 0
    %1866 = vmatpush2.bf16.msra.mxu0 0
    %1867 = vmatprep.mubr.bf16.mxu0 0
    %1868 = vmatmul.mubr.bf16.gmra.mxu0 %v859
    %v1869 = vpop.f32.mrf.mxu0
    %v1870 = vadd.f32 %v320, %v1869
    %v1871 = vpop.f32.mrf.mxu0
    %v1872 = vadd.f32 %v324, %v1871
    %v1873 = vpop.f32.mrf.mxu0
    %v1874 = vpop.f32.mrf.mxu0
    %1875 = vdwg.mxu0
    %1876 = vmatprep.subr.bf16.mxu0 0
    %1877 = vmatpush1.bf16.msra.mxu0 0
    %1878 = vmatprep.subr.bf16.mxu0 0
    %1879 = vmatpush1.bf16.msra.mxu0 0
    %1880 = vmatprep.subr.bf16.mxu0 0
    %1881 = vmatpush1.bf16.msra.mxu0 0
    %1882 = vmatprep.subr.bf16.mxu0 0
    %1883 = vmatpush1.bf16.msra.mxu0 0
    %1884 = vmatprep.subr.bf16.mxu0 0
    %1885 = vmatpush1.bf16.msra.mxu0 0
    %1886 = vmatprep.subr.bf16.mxu0 0
    %1887 = vmatpush1.bf16.msra.mxu0 0
    %1888 = vmatprep.subr.bf16.mxu0 %v995
    %1889 = vmatpush1.bf16.msra.mxu0 %v992
    %1890 = vmatprep.subr.bf16.mxu0 %v750
    %1891 = vmatpush1.bf16.msra.mxu0 %v749
    %1892 = vmatprep.subr.bf16.mxu0 0
    %1893 = vmatpush2.bf16.msra.mxu0 0
    %1894 = vmatprep.subr.bf16.mxu0 0
    %1895 = vmatpush2.bf16.msra.mxu0 0
    %1896 = vmatprep.subr.bf16.mxu0 0
    %1897 = vmatpush2.bf16.msra.mxu0 0
    %1898 = vmatprep.subr.bf16.mxu0 0
    %1899 = vmatpush2.bf16.msra.mxu0 0
    %1900 = vmatprep.subr.bf16.mxu0 0
    %1901 = vmatpush2.bf16.msra.mxu0 0
    %1902 = vmatprep.subr.bf16.mxu0 0
    %1903 = vmatpush2.bf16.msra.mxu0 0
    %1904 = vmatprep.subr.bf16.mxu0 0
    %1905 = vmatpush2.bf16.msra.mxu0 0
    %1906 = vmatprep.subr.bf16.mxu0 0
    %1907 = vmatpush2.bf16.msra.mxu0 0
    %1908 = vmatprep.mubr.bf16.mxu0 0
    %1909 = vmatmul.mubr.bf16.gmra.mxu0 %v859
    %v1910 = vpop.f32.mrf.mxu0
    %v1911 = vadd.f32 %v328, %v1910
    %v1912 = vpop.f32.mrf.mxu0
    %v1913 = vadd.f32 %v332, %v1912
    %v1914 = vpop.f32.mrf.mxu0
    %v1915 = vpop.f32.mrf.mxu0
    %1916 = vdwg.mxu0
    %1917 = vmatprep.subr.bf16.mxu0 0
    %1918 = vmatpush1.bf16.msra.mxu0 0
    %1919 = vmatprep.subr.bf16.mxu0 0
    %1920 = vmatpush1.bf16.msra.mxu0 0
    %1921 = vmatprep.subr.bf16.mxu0 0
    %1922 = vmatpush1.bf16.msra.mxu0 0
    %1923 = vmatprep.subr.bf16.mxu0 0
    %1924 = vmatpush1.bf16.msra.mxu0 0
    %1925 = vmatprep.subr.bf16.mxu0 0
    %1926 = vmatpush1.bf16.msra.mxu0 0
    %1927 = vmatprep.subr.bf16.mxu0 0
    %1928 = vmatpush1.bf16.msra.mxu0 0
    %1929 = vmatprep.subr.bf16.mxu0 %v1001
    %1930 = vmatpush1.bf16.msra.mxu0 %v998
    %1931 = vmatprep.subr.bf16.mxu0 %v752
    %1932 = vmatpush1.bf16.msra.mxu0 %v751
    %1933 = vmatprep.subr.bf16.mxu0 0
    %1934 = vmatpush2.bf16.msra.mxu0 0
    %1935 = vmatprep.subr.bf16.mxu0 0
    %1936 = vmatpush2.bf16.msra.mxu0 0
    %1937 = vmatprep.subr.bf16.mxu0 0
    %1938 = vmatpush2.bf16.msra.mxu0 0
    %1939 = vmatprep.subr.bf16.mxu0 0
    %1940 = vmatpush2.bf16.msra.mxu0 0
    %1941 = vmatprep.subr.bf16.mxu0 0
    %1942 = vmatpush2.bf16.msra.mxu0 0
    %1943 = vmatprep.subr.bf16.mxu0 0
    %1944 = vmatpush2.bf16.msra.mxu0 0
    %1945 = vmatprep.subr.bf16.mxu0 0
    %1946 = vmatpush2.bf16.msra.mxu0 0
    %1947 = vmatprep.subr.bf16.mxu0 0
    %1948 = vmatpush2.bf16.msra.mxu0 0
    %1949 = vmatprep.mubr.bf16.mxu0 0
    %1950 = vmatmul.mubr.bf16.gmra.mxu0 %v859
    %v1951 = vpop.f32.mrf.mxu0
    %v1952 = vadd.f32 %v336, %v1951
    %v1953 = vpop.f32.mrf.mxu0
    %v1954 = vadd.f32 %v340, %v1953
    %v1955 = vpop.f32.mrf.mxu0
    %v1956 = vpop.f32.mrf.mxu0
    %1957 = vdwg.mxu0
    %1958 = vmatprep.subr.bf16.mxu0 0
    %1959 = vmatpush1.bf16.msra.mxu0 0
    %1960 = vmatprep.subr.bf16.mxu0 0
    %1961 = vmatpush1.bf16.msra.mxu0 0
    %1962 = vmatprep.subr.bf16.mxu0 0
    %1963 = vmatpush1.bf16.msra.mxu0 0
    %1964 = vmatprep.subr.bf16.mxu0 0
    %1965 = vmatpush1.bf16.msra.mxu0 0
    %1966 = vmatprep.subr.bf16.mxu0 0
    %1967 = vmatpush1.bf16.msra.mxu0 0
    %1968 = vmatprep.subr.bf16.mxu0 0
    %1969 = vmatpush1.bf16.msra.mxu0 0
    %1970 = vmatprep.subr.bf16.mxu0 %v1007
    %1971 = vmatpush1.bf16.msra.mxu0 %v1004
    %1972 = vmatprep.subr.bf16.mxu0 %v754
    %1973 = vmatpush1.bf16.msra.mxu0 %v753
    %1974 = vmatprep.subr.bf16.mxu0 0
    %1975 = vmatpush2.bf16.msra.mxu0 0
    %1976 = vmatprep.subr.bf16.mxu0 0
    %1977 = vmatpush2.bf16.msra.mxu0 0
    %1978 = vmatprep.subr.bf16.mxu0 0
    %1979 = vmatpush2.bf16.msra.mxu0 0
    %1980 = vmatprep.subr.bf16.mxu0 0
    %1981 = vmatpush2.bf16.msra.mxu0 0
    %1982 = vmatprep.subr.bf16.mxu0 0
    %1983 = vmatpush2.bf16.msra.mxu0 0
    %1984 = vmatprep.subr.bf16.mxu0 0
    %1985 = vmatpush2.bf16.msra.mxu0 0
    %1986 = vmatprep.subr.bf16.mxu0 0
    %1987 = vmatpush2.bf16.msra.mxu0 0
    %1988 = vmatprep.subr.bf16.mxu0 0
    %1989 = vmatpush2.bf16.msra.mxu0 0
    %1990 = vmatprep.mubr.bf16.mxu0 0
    %1991 = vmatmul.mubr.bf16.gmra.mxu0 %v859
    %v1992 = vpop.f32.mrf.mxu0
    %v1993 = vadd.f32 %v344, %v1992
    %v1994 = vpop.f32.mrf.mxu0
    %v1995 = vadd.f32 %v348, %v1994
    %v1996 = vpop.f32.mrf.mxu0
    %v1997 = vpop.f32.mrf.mxu0
    %1998 = vdwg.mxu0
    %1999 = vmatprep.subr.bf16.mxu0 0
    %2000 = vmatpush1.bf16.msra.mxu0 0
    %2001 = vmatprep.subr.bf16.mxu0 0
    %2002 = vmatpush1.bf16.msra.mxu0 0
    %2003 = vmatprep.subr.bf16.mxu0 0
    %2004 = vmatpush1.bf16.msra.mxu0 0
    %2005 = vmatprep.subr.bf16.mxu0 0
    %2006 = vmatpush1.bf16.msra.mxu0 0
    %2007 = vmatprep.subr.bf16.mxu0 0
    %2008 = vmatpush1.bf16.msra.mxu0 0
    %2009 = vmatprep.subr.bf16.mxu0 0
    %2010 = vmatpush1.bf16.msra.mxu0 0
    %2011 = vmatprep.subr.bf16.mxu0 %v1013
    %2012 = vmatpush1.bf16.msra.mxu0 %v1010
    %2013 = vmatprep.subr.bf16.mxu0 %v756
    %2014 = vmatpush1.bf16.msra.mxu0 %v755
    %2015 = vmatprep.subr.bf16.mxu0 0
    %2016 = vmatpush2.bf16.msra.mxu0 0
    %2017 = vmatprep.subr.bf16.mxu0 0
    %2018 = vmatpush2.bf16.msra.mxu0 0
    %2019 = vmatprep.subr.bf16.mxu0 0
    %2020 = vmatpush2.bf16.msra.mxu0 0
    %2021 = vmatprep.subr.bf16.mxu0 0
    %2022 = vmatpush2.bf16.msra.mxu0 0
    %2023 = vmatprep.subr.bf16.mxu0 0
    %2024 = vmatpush2.bf16.msra.mxu0 0
    %2025 = vmatprep.subr.bf16.mxu0 0
    %2026 = vmatpush2.bf16.msra.mxu0 0
    %2027 = vmatprep.subr.bf16.mxu0 0
    %2028 = vmatpush2.bf16.msra.mxu0 0
    %2029 = vmatprep.subr.bf16.mxu0 0
    %2030 = vmatpush2.bf16.msra.mxu0 0
    %2031 = vmatprep.mubr.bf16.mxu0 0
    %2032 = vmatmul.mubr.bf16.gmra.mxu0 %v859
    %v2033 = vpop.f32.mrf.mxu0
    %v2034 = vadd.f32 %v352, %v2033
    %v2035 = vpop.f32.mrf.mxu0
    %v2036 = vadd.f32 %v356, %v2035
    %v2037 = vpop.f32.mrf.mxu0
    %v2038 = vpop.f32.mrf.mxu0
    %2039 = vdwg.mxu0
    %v2090 = vcombine.low %v1050, %v1052
    %v2091 = vcombine.low %v1091, %v1093
    %v2093 = vunpack.c.l.s4 1983009808
    %v2094 = vunpack.c.0.s8 %v2093
    %v2095 = vlaneseq
    %v2096 = vshrl.u32 %v2095, 7
    %v2097 = vsub.s32 %v2094, %v2096
    %v2098 = vrot.slane %v2090, %v2097
    %v2100 = vunpack.c.l.s4 1983009808
    %v2101 = vunpack.c.0.s8 %v2100
    %v2102 = vlaneseq
    %v2103 = vshrl.u32 %v2102, 7
    %v2104 = vsub.s32 %v2101, %v2103
    %v2105 = vrot.slane %v2091, %v2104
    %v2106 = vcombine.low %v2098, %v2105
    %v2107 = vcombine.low %v1132, %v1134
    %v2108 = vcombine.low %v1173, %v1175
    %v2110 = vunpack.c.l.s4 1983009808
    %v2111 = vunpack.c.0.s8 %v2110
    %v2112 = vlaneseq
    %v2113 = vshrl.u32 %v2112, 7
    %v2114 = vsub.s32 %v2111, %v2113
    %v2115 = vrot.slane %v2107, %v2114
    %v2117 = vunpack.c.l.s4 1983009808
    %v2118 = vunpack.c.0.s8 %v2117
    %v2119 = vlaneseq
    %v2120 = vshrl.u32 %v2119, 7
    %v2121 = vsub.s32 %v2118, %v2120
    %v2122 = vrot.slane %v2108, %v2121
    %v2123 = vcombine.low %v2115, %v2122
    %v2124 = vcombine.low %v1214, %v1216
    %v2125 = vcombine.low %v1255, %v1257
    %v2127 = vunpack.c.l.s4 1983009808
    %v2128 = vunpack.c.0.s8 %v2127
    %v2129 = vlaneseq
    %v2130 = vshrl.u32 %v2129, 7
    %v2131 = vsub.s32 %v2128, %v2130
    %v2132 = vrot.slane %v2124, %v2131
    %v2134 = vunpack.c.l.s4 1983009808
    %v2135 = vunpack.c.0.s8 %v2134
    %v2136 = vlaneseq
    %v2137 = vshrl.u32 %v2136, 7
    %v2138 = vsub.s32 %v2135, %v2137
    %v2139 = vrot.slane %v2125, %v2138
    %v2140 = vcombine.low %v2132, %v2139
    %v2141 = vcombine.low %v1296, %v1298
    %v2142 = vcombine.low %v1337, %v1339
    %v2144 = vunpack.c.l.s4 1983009808
    %v2145 = vunpack.c.0.s8 %v2144
    %v2146 = vlaneseq
    %v2147 = vshrl.u32 %v2146, 7
    %v2148 = vsub.s32 %v2145, %v2147
    %v2149 = vrot.slane %v2141, %v2148
    %v2151 = vunpack.c.l.s4 1983009808
    %v2152 = vunpack.c.0.s8 %v2151
    %v2153 = vlaneseq
    %v2154 = vshrl.u32 %v2153, 7
    %v2155 = vsub.s32 %v2152, %v2154
    %v2156 = vrot.slane %v2142, %v2155
    %v2157 = vcombine.low %v2149, %v2156
    %v2158 = vcombine.low %v1378, %v1380
    %v2159 = vcombine.low %v1419, %v1421
    %v2161 = vunpack.c.l.s4 1983009808
    %v2162 = vunpack.c.0.s8 %v2161
    %v2163 = vlaneseq
    %v2164 = vshrl.u32 %v2163, 7
    %v2165 = vsub.s32 %v2162, %v2164
    %v2166 = vrot.slane %v2158, %v2165
    %v2168 = vunpack.c.l.s4 1983009808
    %v2169 = vunpack.c.0.s8 %v2168
    %v2170 = vlaneseq
    %v2171 = vshrl.u32 %v2170, 7
    %v2172 = vsub.s32 %v2169, %v2171
    %v2173 = vrot.slane %v2159, %v2172
    %v2174 = vcombine.low %v2166, %v2173
    %v2175 = vcombine.low %v1460, %v1462
    %v2176 = vcombine.low %v1501, %v1503
    %v2178 = vunpack.c.l.s4 1983009808
    %v2179 = vunpack.c.0.s8 %v2178
    %v2180 = vlaneseq
    %v2181 = vshrl.u32 %v2180, 7
    %v2182 = vsub.s32 %v2179, %v2181
    %v2183 = vrot.slane %v2175, %v2182
    %v2185 = vunpack.c.l.s4 1983009808
    %v2186 = vunpack.c.0.s8 %v2185
    %v2187 = vlaneseq
    %v2188 = vshrl.u32 %v2187, 7
    %v2189 = vsub.s32 %v2186, %v2188
    %v2190 = vrot.slane %v2176, %v2189
    %v2191 = vcombine.low %v2183, %v2190
    %v2192 = vcombine.low %v1542, %v1544
    %v2193 = vcombine.low %v1583, %v1585
    %v2195 = vunpack.c.l.s4 1983009808
    %v2196 = vunpack.c.0.s8 %v2195
    %v2197 = vlaneseq
    %v2198 = vshrl.u32 %v2197, 7
    %v2199 = vsub.s32 %v2196, %v2198
    %v2200 = vrot.slane %v2192, %v2199
    %v2202 = vunpack.c.l.s4 1983009808
    %v2203 = vunpack.c.0.s8 %v2202
    %v2204 = vlaneseq
    %v2205 = vshrl.u32 %v2204, 7
    %v2206 = vsub.s32 %v2203, %v2205
    %v2207 = vrot.slane %v2193, %v2206
    %v2208 = vcombine.low %v2200, %v2207
    %v2209 = vcombine.low %v1624, %v1626
    %v2210 = vcombine.low %v1665, %v1667
    %v2212 = vunpack.c.l.s4 1983009808
    %v2213 = vunpack.c.0.s8 %v2212
    %v2214 = vlaneseq
    %v2215 = vshrl.u32 %v2214, 7
    %v2216 = vsub.s32 %v2213, %v2215
    %v2217 = vrot.slane %v2209, %v2216
    %v2219 = vunpack.c.l.s4 1983009808
    %v2220 = vunpack.c.0.s8 %v2219
    %v2221 = vlaneseq
    %v2222 = vshrl.u32 %v2221, 7
    %v2223 = vsub.s32 %v2220, %v2222
    %v2224 = vrot.slane %v2210, %v2223
    %v2225 = vcombine.low %v2217, %v2224
    %v2226 = vcombine.low %v1706, %v1708
    %v2227 = vcombine.low %v1747, %v1749
    %v2229 = vunpack.c.l.s4 1983009808
    %v2230 = vunpack.c.0.s8 %v2229
    %v2231 = vlaneseq
    %v2232 = vshrl.u32 %v2231, 7
    %v2233 = vsub.s32 %v2230, %v2232
    %v2234 = vrot.slane %v2226, %v2233
    %v2236 = vunpack.c.l.s4 1983009808
    %v2237 = vunpack.c.0.s8 %v2236
    %v2238 = vlaneseq
    %v2239 = vshrl.u32 %v2238, 7
    %v2240 = vsub.s32 %v2237, %v2239
    %v2241 = vrot.slane %v2227, %v2240
    %v2242 = vcombine.low %v2234, %v2241
    %v2243 = vcombine.low %v1788, %v1790
    %v2244 = vcombine.low %v1829, %v1831
    %v2246 = vunpack.c.l.s4 1983009808
    %v2247 = vunpack.c.0.s8 %v2246
    %v2248 = vlaneseq
    %v2249 = vshrl.u32 %v2248, 7
    %v2250 = vsub.s32 %v2247, %v2249
    %v2251 = vrot.slane %v2243, %v2250
    %v2253 = vunpack.c.l.s4 1983009808
    %v2254 = vunpack.c.0.s8 %v2253
    %v2255 = vlaneseq
    %v2256 = vshrl.u32 %v2255, 7
    %v2257 = vsub.s32 %v2254, %v2256
    %v2258 = vrot.slane %v2244, %v2257
    %v2259 = vcombine.low %v2251, %v2258
    %v2260 = vcombine.low %v1870, %v1872
    %v2261 = vcombine.low %v1911, %v1913
    %v2263 = vunpack.c.l.s4 1983009808
    %v2264 = vunpack.c.0.s8 %v2263
    %v2265 = vlaneseq
    %v2266 = vshrl.u32 %v2265, 7
    %v2267 = vsub.s32 %v2264, %v2266
    %v2268 = vrot.slane %v2260, %v2267
    %v2270 = vunpack.c.l.s4 1983009808
    %v2271 = vunpack.c.0.s8 %v2270
    %v2272 = vlaneseq
    %v2273 = vshrl.u32 %v2272, 7
    %v2274 = vsub.s32 %v2271, %v2273
    %v2275 = vrot.slane %v2261, %v2274
    %v2276 = vcombine.low %v2268, %v2275
    %v2277 = vcombine.low %v1952, %v1954
    %v2278 = vcombine.low %v1993, %v1995
    %v2280 = vunpack.c.l.s4 1983009808
    %v2281 = vunpack.c.0.s8 %v2280
    %v2282 = vlaneseq
    %v2283 = vshrl.u32 %v2282, 7
    %v2284 = vsub.s32 %v2281, %v2283
    %v2285 = vrot.slane %v2277, %v2284
    %v2287 = vunpack.c.l.s4 1983009808
    %v2288 = vunpack.c.0.s8 %v2287
    %v2289 = vlaneseq
    %v2290 = vshrl.u32 %v2289, 7
    %v2291 = vsub.s32 %v2288, %v2290
    %v2292 = vrot.slane %v2278, %v2291
    %v2293 = vcombine.low %v2285, %v2292
    %v2294 = vcombine.low %v2034, %v2036
    %v2296 = vunpack.c.l.s4 1983009808
    %v2297 = vunpack.c.0.s8 %v2296
    %v2298 = vlaneseq
    %v2299 = vshrl.u32 %v2298, 7
    %v2300 = vsub.s32 %v2297, %v2299
    %v2301 = vrot.slane %v2294, %v2300
    %2315 = vst [vmem:[%s3] sm:$0xff] %v2106
    %2316 = vst [vmem:[%s3 + $0x8] sm:$0xff] %v2123
    %2317 = vst [vmem:[%s3 + $0x10] sm:$0xff] %v2140
    %2318 = vst [vmem:[%s3 + $0x18] sm:$0xff] %v2157
    %2319 = vst [vmem:[%s3 + $0x20] sm:$0xff] %v2174
    %2320 = vst [vmem:[%s3 + $0x28] sm:$0xff] %v2191
    %2321 = vst [vmem:[%s3 + $0x30] sm:$0xff] %v2208
    %2322 = vst [vmem:[%s3 + $0x38] sm:$0xff] %v2225
    %2323 = vst [vmem:[%s3 + $0x40] sm:$0xff] %v2242
    %2324 = vst [vmem:[%s3 + $0x48] sm:$0xff] %v2259
    %2325 = vst [vmem:[%s3 + $0x50] sm:$0xff] %v2276
    %2326 = vst [vmem:[%s3 + $0x58] sm:$0xff] %v2293
    %2327 = vst [vmem:[%s3 + $0x60] sm:$0xf] %v2301
    // Predicated region
    $region22: #{model_image_forward.1} parent=1 // pred_check
      _
    $region23: #{model_image_forward.1} parent=1 // pred_check_branch
      %2329 = sbr.rel (0) target = $region25
    $region24: #{model_image_forward.1} parent=1 // pred_region
      _
    $region25: #{model_image_forward.1} parent=1 // pred_fallthru
      _
    // Predicated region
    $region26: #{model_image_forward.1} parent=1 // pred_check
      _
    $region27: #{model_image_forward.1} parent=1 // pred_check_branch
      %2331 = sbr.rel (0) target = $region29
    $region28: #{model_image_forward.1} parent=1 // pred_region
      _
    $region29: #{model_image_forward.1} parent=1 // pred_fallthru
      _
    %2332 = vsyncpa [#allocation3], 1
    %2333 = vsyncpa [#allocation5], 1

</llo_original>
